<compile_context>
chip_gen: v7x
topology: tpu7x:2x2x1
jax: 0.10.0
libtpu: 0.0.40
codegen_flags: <defaults>
</compile_context>

<pallas_src>
import functools

import jax
import jax.numpy as jnp
import numpy as np
from jax.experimental import pallas as pl
from jax.experimental.pallas import tpu as pltpu

LN_EPS = 1e-5


# ----------------------------------------------------------------------------- helpers
def _round_up(v, m):
    return ((v + m - 1) // m) * m


def _pick_tile(n_pad, target):
    """Largest multiple of 128 that divides n_pad and is <= target (min 128)."""
    t = max(128, (min(target, n_pad) // 128) * 128)
    while n_pad % t != 0:
        t -= 128
    return max(t, 128)


def _vmem_budget_bytes():
    """Generation-aware VMEM budget (v7x: 64 MiB/TC, v5e/v6e: 128 MiB)."""
    try:
        cap = int(pltpu.get_tpu_info().vmem_capacity_bytes)
    except Exception:
        cap = 64 * 1024 * 1024  # conservative fallback = v7x per-TC VMEM
    # leave headroom for compiler scratch; never ask for more than ~100 MiB.
    return min((cap * 3) // 4, 100 * 1024 * 1024)


def _layer_vmem_bytes(tm, tk, n_pad, cpad, opad, x_resident, out_itemsize):
    """Conservative per-layer VMEM estimate (all inputs counted double-buffered)."""
    a_bytes = 2 * tm * tk * 2                                   # bf16 A tiles
    xk_bytes = (2 * n_pad * cpad * 2) if x_resident else (2 * tk * cpad * 2)
    xr_bytes = 2 * tm * cpad * 2
    w_bytes = 2 * (2 * cpad) * opad * 2
    out_bytes = 2 * tm * opad * out_itemsize
    acc_bytes = tm * 2 * cpad * 4                               # f32 accumulator
    misc = 2 * 2 * opad * 4                                     # gamma / beta
    return a_bytes + xk_bytes + xr_bytes + w_bytes + out_bytes + acc_bytes + misc


def _fit_tiles(tm, tk, n_pad, cpad, opad, out_itemsize, budget):
    """Decide X residency and shrink tiles until the VMEM budget is met."""
    x_resident = (2 * n_pad * cpad * 2) <= min(budget // 3, 16 * 1024 * 1024)
    while _layer_vmem_bytes(tm, tk, n_pad, cpad, opad, x_resident, out_itemsize) > budget:
        if tk > 128:
            tk = _pick_tile(n_pad, tk - 128)
        elif tm > 128:
            tm = _pick_tile(n_pad, tm - 128)
        elif x_resident:
            x_resident = False
        else:
            break
    return tm, tk, x_resident


# ----------------------------------------------------------------------------- kernels
def _sage_ln_relu_kernel(a_ref, xk_ref, xr_ref, w_ref, gamma_ref, beta_ref,
                         out_ref, acc_ref, *, cpad, tk, true_feat, x_resident):
    """WeightedSAGEConv + LayerNorm + ReLU.  Grid = (row tiles, k tiles)."""
    k = pl.program_id(1)

    @pl.when(k == 0)
    def _init():
        # left half of the fused LHS: A @ X accumulator; right half: self rows (lin_r).
        acc_ref[:, :cpad] = jnp.zeros((acc_ref.shape[0], cpad), jnp.float32)
        acc_ref[:, cpad:] = xr_ref[...].astype(jnp.float32)

    # aggregation: this k-tile of the normalized adjacency (bf16 MXU, f32 acc).
    if x_resident:
        off = pl.multiple_of(k * tk, 128)
        x_tile = xk_ref[pl.ds(off, tk), :]        # slice the VMEM-resident X
    else:
        x_tile = xk_ref[...]                      # streamed (tk, cpad) tile
    acc_ref[:, :cpad] += jnp.dot(a_ref[...], x_tile,
                                 preferred_element_type=jnp.float32)

    @pl.when(k == pl.num_programs(1) - 1)
    def _finalize():
        # fused lin_l/lin_r: one 2*cpad-wide contraction on the MXU.
        h_in = acc_ref[...].astype(jnp.bfloat16)                    # (TM, 2*cpad)
        h = jnp.dot(h_in, w_ref[...], preferred_element_type=jnp.float32)
        # LayerNorm over the TRUE feature width.  Padded lanes of h are exactly zero
        # (padded W columns are zero); the centered term is masked to zero on padded
        # lanes, so the two-pass variance is exact and padded activation lanes stay
        # zero regardless of gamma/beta padding.
        inv_feat = 1.0 / true_feat
        mean = jnp.sum(h, axis=-1, keepdims=True) * inv_feat
        lane = jax.lax.broadcasted_iota(jnp.int32, h.shape, 1)
        centered = jnp.where(lane < true_feat, h - mean, 0.0)
        var = jnp.sum(centered * centered, axis=-1, keepdims=True) * inv_feat
        ln = centered * jax.lax.rsqrt(var + LN_EPS)
        ln = ln * gamma_ref[...] + beta_ref[...]
        # ReLU; dropout is eval-mode identity.
        out_ref[...] = jnp.maximum(ln, 0.0).astype(out_ref.dtype)


def _sage_kernel(a_ref, xk_ref, xr_ref, w_ref, out_ref, acc_ref, *,
                 cpad, tk, x_resident):
    """WeightedSAGEConv only (layer 2).  Grid = (row tiles, k tiles)."""
    k = pl.program_id(1)

    @pl.when(k == 0)
    def _init():
        acc_ref[:, :cpad] = jnp.zeros((acc_ref.shape[0], cpad), jnp.float32)
        acc_ref[:, cpad:] = xr_ref[...].astype(jnp.float32)

    if x_resident:
        off = pl.multiple_of(k * tk, 128)
        x_tile = xk_ref[pl.ds(off, tk), :]
    else:
        x_tile = xk_ref[...]
    acc_ref[:, :cpad] += jnp.dot(a_ref[...], x_tile,
                                 preferred_element_type=jnp.float32)

    @pl.when(k == pl.num_programs(1) - 1)
    def _finalize():
        h_in = acc_ref[...].astype(jnp.bfloat16)
        out_ref[...] = jnp.dot(h_in, w_ref[...],
                               preferred_element_type=jnp.float32).astype(out_ref.dtype)


# ------------------------------------------------------------------------ layer wrapper
def _sage_layer(a, feat, w_fused, gamma, beta, out_dtype, *, tm, tk, fuse_ln,
                true_feat, vmem_budget):
    n_pad = a.shape[0]
    cpad = feat.shape[1]
    opad = w_fused.shape[1]
    out_itemsize = np.dtype(out_dtype).itemsize

    tm, tk, x_resident = _fit_tiles(tm, tk, n_pad, cpad, opad, out_itemsize, vmem_budget)
    grid = (n_pad // tm, n_pad // tk)

    a_spec = pl.BlockSpec((tm, tk), lambda i, k: (i, k))            # streamed A tile
    if x_resident:
        # constant index_map -> Pallas fetches X once and keeps it VMEM-resident
        # across the whole grid (cuts the X HBM stream from grid[0] passes to 1).
        xk_spec = pl.BlockSpec((n_pad, cpad), lambda i, k: (0, 0))
    else:
        xk_spec = pl.BlockSpec((tk, cpad), lambda i, k: (k, 0))     # streamed X tile
    xr_spec = pl.BlockSpec((tm, cpad), lambda i, k: (i, 0))         # self-row feats
    w_spec = pl.BlockSpec((2 * cpad, opad), lambda i, k: (0, 0))    # fused [W_l; W_r]
    out_spec = pl.BlockSpec((tm, opad), lambda i, k: (i, 0))        # lane-dense output

    compiler_params = pltpu.CompilerParams(
        # row tiles are independent -> split across TensorCores (v7x megacore);
        # k is the reduction axis feeding the resident accumulator -> arbitrary.
        dimension_semantics=("parallel", "arbitrary"),
        # generation-aware budget (also used above to size tiles / X residency).
        vmem_limit_bytes=int(vmem_budget),
    )

    x_bytes = feat.size * feat.dtype.itemsize
    cost = pl.CostEstimate(
        flops=(2 * n_pad * n_pad * cpad
               + 2 * n_pad * (2 * cpad) * opad
               + (10 * n_pad * opad if fuse_ln else 0)),
        transcendentals=n_pad if fuse_ln else 0,
        bytes_accessed=int(a.size * a.dtype.itemsize
                           + (2 if x_resident else grid[0] + 1) * x_bytes
                           + w_fused.size * w_fused.dtype.itemsize
                           + n_pad * opad * out_itemsize),
    )

    if fuse_ln:
        kernel = functools.partial(_sage_ln_relu_kernel, cpad=cpad, tk=tk,
                                   true_feat=true_feat, x_resident=x_resident)
        in_specs = [a_spec, xk_spec, xr_spec, w_spec,
                    pl.BlockSpec((1, opad), lambda i, k: (0, 0)),   # gamma
                    pl.BlockSpec((1, opad), lambda i, k: (0, 0))]   # beta
        inputs = (a, feat, feat, w_fused, gamma, beta)
    else:
        kernel = functools.partial(_sage_kernel, cpad=cpad, tk=tk,
                                   x_resident=x_resident)
        in_specs = [a_spec, xk_spec, xr_spec, w_spec]
        inputs = (a, feat, feat, w_fused)

    return pl.pallas_call(
        kernel,
        out_shape=jax.ShapeDtypeStruct((n_pad, opad), out_dtype),
        grid_spec=pltpu.PrefetchScalarGridSpec(
            num_scalar_prefetch=0,
            grid=grid,
            in_specs=in_specs,
            out_specs=out_spec,
            scratch_shapes=[pltpu.VMEM((tm, 2 * cpad), jnp.float32)],
        ),
        compiler_params=compiler_params,
        cost_estimate=cost,
    )(*inputs)


# --------------------------------------------------------------------------- glue code
def build_norm_adjacency(edge_index, edge_weight, num_nodes, n_pad=None):
    """Plain-JAX glue: dense normalized adjacency reproducing PyG semantics."""
    if n_pad is None:
        n_pad = num_nodes
    src = edge_index[0]
    dst = edge_index[1]
    if edge_weight is None:
        edge_weight = jnp.ones((edge_index.shape[1],), dtype=jnp.float32)
    deg = jnp.zeros((n_pad,), jnp.float32).at[dst].add(1.0)
    w = edge_weight / jnp.clip(deg, 1e-12)[dst]             # normalize=True
    a = jnp.zeros((n_pad, n_pad), jnp.float32).at[dst, src].add(w)
    a = a / jnp.maximum(deg, 1.0)[:, None]                  # aggr='mean'
    return a


def graphsage_dp_forward(x, edge_index, edge_weight, params, *, tm=512, tk=512):
    """Forward pass of GraphSAGE_DP (eval mode) via two fused Pallas conv kernels."""
    n, c_in = x.shape
    hid = params["w1l"].shape[1]
    c_out = params["w2l"].shape[1]

    # pad node axis to 128, feature axes to 128 lanes (lane-dense loads/stores).
    n_pad = _round_up(n, 128)
    cin_p, hid_p, cout_p = (_round_up(c, 128) for c in (c_in, hid, c_out))

    vmem_budget = _vmem_budget_bytes()

    # Big tiles for DMA efficiency and >=256-deep contractions (v6e/v7x MXU fill);
    # cap tm so the "parallel" row axis keeps >=2 tiles (both v7x TensorCores fed).
    tm = _pick_tile(n_pad, tm)
    if n_pad >= 256:
        tm = min(tm, _pick_tile(n_pad, n_pad // 2))
    tk = _pick_tile(n_pad, tk)

    # dense normalized adjacency, bf16 for the MXU / halved HBM bytes.
    a = build_norm_adjacency(edge_index, edge_weight, n, n_pad).astype(jnp.bfloat16)

    x_p = jnp.zeros((n_pad, cin_p), jnp.bfloat16).at[:n, :c_in].set(
        x.astype(jnp.bfloat16))

    # fused [W_l; W_r] weights, zero-padded (zero padding keeps the math exact).
    w1 = jnp.zeros((2 * cin_p, hid_p), jnp.bfloat16)
    w1 = w1.at[:c_in, :hid].set(params["w1l"].astype(jnp.bfloat16))
    w1 = w1.at[cin_p:cin_p + c_in, :hid].set(params["w1r"].astype(jnp.bfloat16))
    w2 = jnp.zeros((2 * hid_p, cout_p), jnp.bfloat16)
    w2 = w2.at[:hid, :c_out].set(params["w2l"].astype(jnp.bfloat16))
    w2 = w2.at[hid_p:hid_p + hid, :c_out].set(params["w2r"].astype(jnp.bfloat16))

    # INVARIANT: gamma/beta are zero-padded so padded hidden lanes stay exactly zero
    # (the kernel additionally masks padded lanes, so this is now belt-and-braces).
    gamma = jnp.zeros((1, hid_p), jnp.float32).at[:, :hid].set(
        params["gamma"].reshape(1, -1).astype(jnp.float32))
    beta = jnp.zeros((1, hid_p), jnp.float32).at[:, :hid].set(
        params["beta"].reshape(1, -1).astype(jnp.float32))

    # layer 1: conv1 + LayerNorm + ReLU (+ eval-mode dropout), bf16 activations out.
    r = _sage_layer(a, x_p, w1, gamma, beta, jnp.bfloat16,
                    tm=tm, tk=tk, fuse_ln=True, true_feat=hid,
                    vmem_budget=vmem_budget)
    # layer 2: conv2.
    out = _sage_layer(a, r, w2, None, None, jnp.float32,
                      tm=tm, tk=tk, fuse_ln=False, true_feat=c_out,
                      vmem_budget=vmem_budget)

    return out[:n, :c_out]


# -------------------------------------------------------------------------- references
def reference_forward_f32(x, edge_index, edge_weight, params):
    """Pure-f32 JAX reference (faithful to the torch module's semantics)."""
    n = x.shape[0]
    a = build_norm_adjacency(edge_index, edge_weight, n)
    h = a @ x @ params["w1l"] + x @ params["w1r"]
    mean = h.mean(-1, keepdims=True)
    var = ((h - mean) ** 2).mean(-1, keepdims=True)
    h = (h - mean) / jnp.sqrt(var + LN_EPS) * params["gamma"] + params["beta"]
    h = jnp.maximum(h, 0.0)
    return a @ h @ params["w2l"] + h @ params["w2r"]


def reference_forward_bf16(x, edge_index, edge_weight, params):
    """Reference that mirrors the kernel's bf16-input / f32-accumulate math."""
    n = x.shape[0]
    a = build_norm_adjacency(edge_index, edge_weight, n).astype(jnp.bfloat16)
    xb = x.astype(jnp.bfloat16)
    f32dot = lambda u, v: jnp.dot(u, v, preferred_element_type=jnp.float32)
    agg1 = f32dot(a, xb).astype(jnp.bfloat16)
    h = (f32dot(agg1, params["w1l"].astype(jnp.bfloat16))
         + f32dot(xb, params["w1r"].astype(jnp.bfloat16)))
    mean = jnp.mean(h, -1, keepdims=True)
    var = jnp.mean((h - mean) ** 2, -1, keepdims=True)      # two-pass, like the kernel
    h = (h - mean) * jax.lax.rsqrt(var + LN_EPS) * params["gamma"] + params["beta"]
    r = jnp.maximum(h, 0.0).astype(jnp.bfloat16)
    agg2 = f32dot(a, r).astype(jnp.bfloat16)
    return (f32dot(agg2, params["w2l"].astype(jnp.bfloat16))
            + f32dot(r, params["w2r"].astype(jnp.bfloat16)))


if __name__ == "__main__":
    # small shapes: N=200 nodes, in=8, hidden=32, out=16, E=800 edges
    # (N pads to 256 -> a 2x1 row/k tile grid with VMEM-resident X)
    N, C_IN, HID, C_OUT, E = 200, 8, 32, 16, 800

    key = jax.random.PRNGKey(0)
    kx, ke1, ke2, k1, k2, k3, k4 = jax.random.split(key, 7)

    x = jax.random.normal(kx, (N, C_IN), dtype=jnp.float32)
    edge_index = jnp.stack([
        jax.random.randint(ke1, (E,), 0, N),
        jax.random.randint(ke2, (E,), 0, N),
    ]).astype(jnp.int32)
    edge_weight = None  # module default: ones

    # nn.Linear(in, out) weight is (out, in); store transposed (in, out) so y = x @ W
    def lin_init(k, fan_in, fan_out):
        bound = 1.0 / np.sqrt(fan_in)
        return jax.random.uniform(k, (fan_in, fan_out), jnp.float32, -bound, bound)

    params = {
        "w1l": lin_init(k1, C_IN, HID),
        "w1r": lin_init(k2, C_IN, HID),
        "gamma": jnp.ones((HID,), jnp.float32),
        "beta": jnp.zeros((HID,), jnp.float32),
        "w2l": lin_init(k3, HID, C_OUT),
        "w2r": lin_init(k4, HID, C_OUT),
    }

    out = graphsage_dp_forward(x, edge_index, edge_weight, params)
    out = jax.block_until_ready(out)

    # tight check vs a reference that mirrors the kernel's bf16/f32 math
    ref_q = reference_forward_bf16(x, edge_index, edge_weight, params)
    np.testing.assert_allclose(np.asarray(out), np.asarray(ref_q), rtol=5e-3, atol=5e-3)

    # loose semantic check vs the full-f32 reference (bf16 MXU inputs -> ~1% error)
    ref_f = reference_forward_f32(x, edge_index, edge_weight, params)
    np.testing.assert_allclose(np.asarray(out), np.asarray(ref_f), rtol=1e-1, atol=1e-1)

    print("KERNEL_OK")
</pallas_src>

<mosaic_0001>
module attributes {stable_mosaic.version = 11 : i64} {
  func.func @_sage_ln_relu_kernel(%arg0: i32, %arg1: i32, %arg2: memref<128x256xbf16, #tpu.memory_space<vmem>>, %arg3: memref<256x128xbf16, #tpu.memory_space<vmem>>, %arg4: memref<128x128xbf16, #tpu.memory_space<vmem>>, %arg5: memref<256x128xbf16, #tpu.memory_space<vmem>>, %arg6: memref<1x128xf32, #tpu.memory_space<vmem>>, %arg7: memref<1x128xf32, #tpu.memory_space<vmem>>, %arg8: memref<128x128xbf16, #tpu.memory_space<vmem>>, %arg9: memref<128x256xf32, #tpu.memory_space<vmem>>) attributes {dimension_semantics = [#tpu.dimension_semantics<parallel>, #tpu.dimension_semantics<arbitrary>], iteration_bounds = array<i64: 2, 1>, scalar_prefetch = 0 : i64, scratch_operands = 1 : i64, tpu.core_type = #tpu.core_type<tc>, window_params = [{transform_indices = @transform_0, window_bounds = array<i64: 128, 256>}, {pipeline_mode = #tpu.pipeline_mode<synchronous>, transform_indices = @transform_1, window_bounds = array<i64: 256, 128>}, {transform_indices = @transform_2, window_bounds = array<i64: 128, 128>}, {pipeline_mode = #tpu.pipeline_mode<synchronous>, transform_indices = @transform_3, window_bounds = array<i64: 256, 128>}, {pipeline_mode = #tpu.pipeline_mode<synchronous>, transform_indices = @transform_4, window_bounds = array<i64: 1, 128>}, {pipeline_mode = #tpu.pipeline_mode<synchronous>, transform_indices = @transform_5, window_bounds = array<i64: 1, 128>}, {transform_indices = @transform_6, window_bounds = array<i64: 128, 128>}]} {
    %c0_i32 = arith.constant 0 : i32
    %0 = arith.cmpi eq, %arg1, %c0_i32 : i32
    %1 = arith.extui %0 : i1 to i32
    %c0_i32_0 = arith.constant 0 : i32
    %2 = arith.cmpi ne, %1, %c0_i32_0 : i32
    scf.if %2 {
      %cst_9 = arith.constant 0.000000e+00 : f32
      %15 = vector.broadcast %cst_9 : f32 to vector<128x128xf32>
      %c0_10 = arith.constant 0 : index
      %c0_11 = arith.constant 0 : index
      %16 = vector.load %arg9[%c0_10, %c0_11] : memref<128x256xf32, #tpu.memory_space<vmem>>, vector<128x128xf32>
      tpu.vector_store %arg9[%c0_10, %c0_11], %15 {strides = array<i32>} : memref<128x256xf32, #tpu.memory_space<vmem>>, vector<128x128xf32>,
      %c0_12 = arith.constant 0 : index
      %c0_13 = arith.constant 0 : index
      %17 = vector.load %arg4[%c0_12, %c0_13] : memref<128x128xbf16, #tpu.memory_space<vmem>>, vector<128x128xbf16>
      %18 = arith.extf %17 : vector<128x128xbf16> to vector<128x128xf32>
      %c0_14 = arith.constant 0 : index
      %c128 = arith.constant 128 : index
      %19 = vector.load %arg9[%c0_14, %c128] : memref<128x256xf32, #tpu.memory_space<vmem>>, vector<128x128xf32>
      tpu.vector_store %arg9[%c0_14, %c128], %18 {strides = array<i32>} : memref<128x256xf32, #tpu.memory_space<vmem>>, vector<128x128xf32>,
    } else {
    }
    %c256_i32 = arith.constant 256 : i32
    %3 = arith.muli %arg1, %c256_i32 : i32
    %4 = tpu.assume_multiple %3, 128 : i32
    %5 = arith.index_cast %4 : i32 to index
    %c0 = arith.constant 0 : index
    %6 = vector.load %arg3[%5, %c0] : memref<256x128xbf16, #tpu.memory_space<vmem>>, vector<256x128xbf16>
    %c0_1 = arith.constant 0 : index
    %c0_2 = arith.constant 0 : index
    %7 = vector.load %arg9[%c0_1, %c0_2] : memref<128x256xf32, #tpu.memory_space<vmem>>, vector<128x128xf32>
    %c0_3 = arith.constant 0 : index
    %c0_4 = arith.constant 0 : index
    %8 = vector.load %arg2[%c0_3, %c0_4] : memref<128x256xbf16, #tpu.memory_space<vmem>>, vector<128x256xbf16>
    %cst = arith.constant dense<0.000000e+00> : vector<128x128xf32>
    %9 = tpu.matmul %8, %6, %cst {dimension_numbers = #tpu.dot_dimension_numbers<[1], [0], [0], [1], [0, 0, 1, 1], [], []>} : vector<128x256xbf16>, vector<256x128xbf16>, vector<128x128xf32> -> vector<128x128xf32>
    %10 = arith.addf %7, %9 : vector<128x128xf32>
    %c0_5 = arith.constant 0 : index
    %c0_6 = arith.constant 0 : index
    %11 = vector.load %arg9[%c0_5, %c0_6] : memref<128x256xf32, #tpu.memory_space<vmem>>, vector<128x128xf32>
    tpu.vector_store %arg9[%c0_5, %c0_6], %10 {strides = array<i32>} : memref<128x256xf32, #tpu.memory_space<vmem>>, vector<128x128xf32>,
    %c0_i32_7 = arith.constant 0 : i32
    %12 = arith.cmpi eq, %arg1, %c0_i32_7 : i32
    %13 = arith.extui %12 : i1 to i32
    %c0_i32_8 = arith.constant 0 : i32
    %14 = arith.cmpi ne, %13, %c0_i32_8 : i32
    scf.if %14 {
      %c0_9 = arith.constant 0 : index
      %c0_10 = arith.constant 0 : index
      %15 = vector.load %arg9[%c0_9, %c0_10] : memref<128x256xf32, #tpu.memory_space<vmem>>, vector<128x256xf32>
      %16 = arith.truncf %15 : vector<128x256xf32> to vector<128x256xbf16>
      %c0_11 = arith.constant 0 : index
      %c0_12 = arith.constant 0 : index
      %17 = vector.load %arg5[%c0_11, %c0_12] : memref<256x128xbf16, #tpu.memory_space<vmem>>, vector<256x128xbf16>
      %cst_13 = arith.constant dense<0.000000e+00> : vector<128x128xf32>
      %18 = tpu.matmul %16, %17, %cst_13 {dimension_numbers = #tpu.dot_dimension_numbers<[1], [0], [0], [1], [0, 0, 1, 1], [], []>} : vector<128x256xbf16>, vector<256x128xbf16>, vector<128x128xf32> -> vector<128x128xf32>
      %cst_14 = arith.constant dense<0.000000e+00> : vector<128xf32>
      %19 = vector.multi_reduction <add>, %18, %cst_14 [1] : vector<128x128xf32> to vector<128xf32>
      %20 = vector.shape_cast %19 : vector<128xf32> to vector<128x1xf32>
      %cst_15 = arith.constant 3.125000e-02 : f32
      %21 = vector.broadcast %cst_15 : f32 to vector<128x1xf32>
      %22 = arith.mulf %20, %21 : vector<128x1xf32>
      %23 = tpu.iota {dimensions = array<i32: 1>} : vector<128x128xi32>
      %c32_i32 = arith.constant 32 : i32
      %24 = vector.broadcast %c32_i32 : i32 to vector<128x128xi32>
      %25 = arith.cmpi slt, %23, %24 : vector<128x128xi32>
      %26 = vector.broadcast %22 : vector<128x1xf32> to vector<128x128xf32>
      %27 = arith.subf %18, %26 : vector<128x128xf32>
      %cst_16 = arith.constant 0.000000e+00 : f32
      %28 = vector.broadcast %cst_16 : f32 to vector<128x128xf32>
      %29 = arith.select %25, %27, %28 : vector<128x128xi1>, vector<128x128xf32>
      %30 = arith.mulf %29, %29 : vector<128x128xf32>
      %cst_17 = arith.constant dense<0.000000e+00> : vector<128xf32>
      %31 = vector.multi_reduction <add>, %30, %cst_17 [1] : vector<128x128xf32> to vector<128xf32>
      %32 = vector.shape_cast %31 : vector<128xf32> to vector<128x1xf32>
      %cst_18 = arith.constant 3.125000e-02 : f32
      %33 = vector.broadcast %cst_18 : f32 to vector<128x1xf32>
      %34 = arith.mulf %32, %33 : vector<128x1xf32>
      %cst_19 = arith.constant 9.99999974E-6 : f32
      %35 = vector.broadcast %cst_19 : f32 to vector<128x1xf32>
      %36 = arith.addf %34, %35 : vector<128x1xf32>
      %37 = math.rsqrt %36 : vector<128x1xf32>
      %38 = vector.broadcast %37 : vector<128x1xf32> to vector<128x128xf32>
      %39 = arith.mulf %29, %38 : vector<128x128xf32>
      %c0_20 = arith.constant 0 : index
      %c0_21 = arith.constant 0 : index
      %40 = vector.load %arg6[%c0_20, %c0_21] : memref<1x128xf32, #tpu.memory_space<vmem>>, vector<1x128xf32>
      %41 = vector.broadcast %40 : vector<1x128xf32> to vector<128x128xf32>
      %42 = arith.mulf %39, %41 : vector<128x128xf32>
      %c0_22 = arith.constant 0 : index
      %c0_23 = arith.constant 0 : index
      %43 = vector.load %arg7[%c0_22, %c0_23] : memref<1x128xf32, #tpu.memory_space<vmem>>, vector<1x128xf32>
      %44 = vector.broadcast %43 : vector<1x128xf32> to vector<128x128xf32>
      %45 = arith.addf %42, %44 : vector<128x128xf32>
      %cst_24 = arith.constant 0.000000e+00 : f32
      %46 = vector.broadcast %cst_24 : f32 to vector<128x128xf32>
      %47 = arith.maximumf %45, %46 : vector<128x128xf32>
      %48 = arith.truncf %47 : vector<128x128xf32> to vector<128x128xbf16>
      %c0_25 = arith.constant 0 : index
      %c0_26 = arith.constant 0 : index
      %49 = vector.load %arg8[%c0_25, %c0_26] : memref<128x128xbf16, #tpu.memory_space<vmem>>, vector<128x128xbf16>
      tpu.vector_store %arg8[%c0_25, %c0_26], %48 {strides = array<i32>} : memref<128x128xbf16, #tpu.memory_space<vmem>>, vector<128x128xbf16>,
    } else {
    }
    return
  }
  func.func @transform_0(%arg0: i32, %arg1: i32) -> (i32, i32) {
    %c0_i32 = arith.constant 0 : i32
    return %arg0, %arg1 : i32, i32
  }
  func.func @transform_1(%arg0: i32, %arg1: i32) -> (i32, i32) {
    %c0_i32 = arith.constant 0 : i32
    %c0_i32_0 = arith.constant 0 : i32
    %c0_i32_1 = arith.constant 0 : i32
    return %c0_i32, %c0_i32_0 : i32, i32
  }
  func.func @transform_2(%arg0: i32, %arg1: i32) -> (i32, i32) {
    %c0_i32 = arith.constant 0 : i32
    %c0_i32_0 = arith.constant 0 : i32
    return %arg0, %c0_i32 : i32, i32
  }
  func.func @transform_3(%arg0: i32, %arg1: i32) -> (i32, i32) {
    %c0_i32 = arith.constant 0 : i32
    %c0_i32_0 = arith.constant 0 : i32
    %c0_i32_1 = arith.constant 0 : i32
    return %c0_i32, %c0_i32_0 : i32, i32
  }
  func.func @transform_4(%arg0: i32, %arg1: i32) -> (i32, i32) {
    %c0_i32 = arith.constant 0 : i32
    %c0_i32_0 = arith.constant 0 : i32
    %c0_i32_1 = arith.constant 0 : i32
    return %c0_i32, %c0_i32_0 : i32, i32
  }
  func.func @transform_5(%arg0: i32, %arg1: i32) -> (i32, i32) {
    %c0_i32 = arith.constant 0 : i32
    %c0_i32_0 = arith.constant 0 : i32
    %c0_i32_1 = arith.constant 0 : i32
    return %c0_i32, %c0_i32_0 : i32, i32
  }
  func.func @transform_6(%arg0: i32, %arg1: i32) -> (i32, i32) {
    %c0_i32 = arith.constant 0 : i32
    %c0_i32_0 = arith.constant 0 : i32
    return %arg0, %c0_i32 : i32, i32
  }
}

</mosaic_0001>

<llo_original>
// kernel: tpu_custom_call.1
$region0: #{tpu_custom_call.1}
  #allocation0 [shape = 'u32[]', space=smem, size = 0x4, offset = 0x4, fixed_abs, tag = 'smem constant byte address 0x4 - core index']
  #allocation1 [shape = 'u32[144,128]{1,0:T(1,128)}', space=vmem, size = 0x12000, scoped, tag = 'internal scratch']
  #allocation2 [shape = 'f32[128,256]{1,0:T(8,128)}', space=vmem, size = 0x20000, scoped, tag = 'scratch operand']
  %s0 = inlined_call_operand.hbm [shape: bf16[256,256], index: 0, kind: input, shape index: {}]
  %s1 = inlined_call_operand.hbm [shape: bf16[256,128], index: 1, kind: input, shape index: {}]
  %s2 = inlined_call_operand.hbm [shape: bf16[256,128], index: 2, kind: input, shape index: {}]
  %s3 = inlined_call_operand.hbm [shape: bf16[256,128], index: 3, kind: input, shape index: {}]
  %s4 = inlined_call_operand.vmem [shape: f32[1,128], index: 4, kind: input, shape index: {}]
  %s5 = inlined_call_operand.vmem [shape: f32[1,128], index: 5, kind: input, shape index: {}]
  %s6 = inlined_call_operand.hbm [shape: bf16[256,128], index: 6, kind: output, shape index: {}]
  %s7 = sld [smem:[#allocation0]]
  $region81: #{tpu_custom_call.1} parent=0
    _
  %s9 = ssub.s32 1, %s7
  %s10 = scalar_select 0, %s9, %s7
  $region1: #{tpu_custom_call.1} parent=0
    #allocation3 [shape = 'u8[131072]{0}', space=vmem, size = 0x20000, scoped, tag = 'input window, operand 0']
    #allocation4 [shape = 's32[2]{0}', space=sflag, size = 0x8, scoped, tag = 'scoped memory for tpu_custom_call.1']
    #allocation5 [shape = 's32[2]{0}', space=sflag, size = 0x8, scoped, tag = 'scoped memory for tpu_custom_call.1']
    #allocation6 [shape = 'u8[65536]{0}', space=vmem, size = 0x10000, scoped, tag = 'input window, operand 1, single buffered']
    #allocation7 [shape = 's32[1]{0}', space=sflag, size = 0x4, scoped, tag = 'scoped memory for tpu_custom_call.1']
    #allocation8 [shape = 'u8[65536]{0}', space=vmem, size = 0x10000, scoped, tag = 'input window, operand 2']
    #allocation9 [shape = 'u8[65536]{0}', space=vmem, size = 0x10000, scoped, tag = 'input window, operand 3, single buffered']
    #allocation10 [shape = 'u8[65536]{0}', space=vmem, size = 0x10000, scoped, tag = 'output window, operand 0']
    %11 = vsyncpa [#allocation4], 0
    %s12 = scalar_lea.sflag [#allocation4], 1
    %13 = vsyncpa %s12, 0
    %14 = vsyncpa [#allocation7], 0
    %15 = vsyncpa [#allocation5], 0
    %s16 = scalar_lea.sflag [#allocation5], 1
    %17 = vsyncpa %s16, 0
    loop: start=0, step=1, limit=4
    $region2: #{tpu_custom_call.1} parent=1 // loop_pre_header
      _
    $region3: #{tpu_custom_call.1} parent=1 // loop_header
      %s19 = sphi 0, %s23
      %p20 = scmp.ge.s32.totalorder %s19, 4
      %s26 = sphi 0, %s38
      %s27 = sphi 0, %s34
      %s28 = sphi 0, %s26
      %s29 = sphi 0, %s27
      %s30 = sphi 0, %s28
      %s31 = sphi 0, %s29
      %s43 = sphi 0, %s45
      %s46 = sphi 0, %s43
      %s47 = sphi 0, %s46
      %s63 = sphi 0, %s47
      %s67 = sphi 0, %s67
      %s69 = sphi 0, %s67
      %s70 = sphi 0, %s69
      %s84 = sphi 0, %s70
      %s90 = sphi 0, %s92
      %s93 = sphi 0, %s90
      %s94 = sphi 0, %s93
      %s110 = sphi 0, %s94
      %s114 = sphi 0, %s114
      %s116 = sphi 0, %s114
      %s117 = sphi 0, %s116
      %s131 = sphi 0, %s117
      %s135 = sphi 0, %s135
      %s137 = sphi 0, %s135
      %s138 = sphi 0, %s137
      %s152 = sphi 0, %s138
      %s156 = sphi 0, %s156
      %s158 = sphi 0, %s156
      %s159 = sphi 0, %s158
      %s173 = sphi 0, %s159
      %s179 = sphi 0, %s181
      %s182 = sphi 0, %s179
      %s183 = sphi 0, %s182
      %s199 = sphi 0, %s183
    $region4: #{tpu_custom_call.1} parent=1 // loop_header_branch
      %22 = sbr.rel (%p20) target = $region8
    $region5: #{tpu_custom_call.1} parent=1 // loop_body
      %s24 = ssub.s32 %s19, 1
      %s25 = ssub.s32 %s19, 2
      %s32 = sadd.s32 1, %s27
      %p33 = scmp.ge.s32.totalorder %s32, 1
      %s34 = scalar_select %p33, 0, %s32
      %s35 = sadd.s32 1, %s26
      %s36 = scalar_select %p33, %s35, %s26
      %p37 = scmp.ge.s32.totalorder %s36, 2
      %s38 = scalar_select %p37, 0, %s36
      %s39 = ssub.s32 %s26, %s38
      %s40 = ssub.s32 %s27, %s34
      %s41 = sor.u32 %s39, %s40
      %p42 = scmp.eq.s32.totalorder %s41, 0
      %s44 = sadd.s32 %s43, 1
      %s45 = scalar_select %p42, %s43, %s44
      %p48 = pneg %p42
      %p49 = scmp.eq.s32.totalorder %s19, 1
      %p50 = por %p48, %p49
      %p51 = scmp.ne.s32.totalorder %s43, %s46
      %p52 = scmp.eq.s32.totalorder %s19, 0
      %p53 = por %p51, %p52
      %p54 = scmp.ne.s32.totalorder %s43, %s46
      %p55 = scmp.eq.s32.totalorder %s24, 1
      %p56 = por %p54, %p55
      %p57 = scmp.ne.s32.totalorder %s46, %s47
      %p58 = scmp.eq.s32.totalorder %s24, 0
      %p59 = por %p57, %p58
      %p60 = scmp.ne.s32.totalorder %s46, %s47
      %p61 = scmp.eq.s32.totalorder %s25, 1
      %p62 = por %p60, %p61
      %p64 = scmp.ne.s32.totalorder %s47, %s63
      %p65 = scmp.eq.s32.totalorder %s25, 0
      %p66 = por %p64, %p65
      %s68 = sadd.s32 %s67, 1
      %p71 = scmp.eq.s32.totalorder %s19, 1
      %p72 = scmp.ne.s32.totalorder %s67, %s69
      %p73 = scmp.eq.s32.totalorder %s19, 0
      %p74 = por %p72, %p73
      %p75 = scmp.ne.s32.totalorder %s67, %s69
      %p76 = scmp.eq.s32.totalorder %s24, 1
      %p77 = por %p75, %p76
      %p78 = scmp.ne.s32.totalorder %s69, %s70
      %p79 = scmp.eq.s32.totalorder %s24, 0
      %p80 = por %p78, %p79
      %p81 = scmp.ne.s32.totalorder %s69, %s70
      %p82 = scmp.eq.s32.totalorder %s25, 1
      %p83 = por %p81, %p82
      %p85 = scmp.ne.s32.totalorder %s70, %s84
      %p86 = scmp.eq.s32.totalorder %s25, 0
      %p87 = por %p85, %p86
      %s88 = ssub.s32 %s26, %s38
      %p89 = scmp.eq.s32.totalorder %s88, 0
      %s91 = sadd.s32 %s90, 1
      %s92 = scalar_select %p89, %s90, %s91
      %p95 = pneg %p89
      %p96 = scmp.eq.s32.totalorder %s19, 1
      %p97 = por %p95, %p96
      %p98 = scmp.ne.s32.totalorder %s90, %s93
      %p99 = scmp.eq.s32.totalorder %s19, 0
      %p100 = por %p98, %p99
      %p101 = scmp.ne.s32.totalorder %s90, %s93
      %p102 = scmp.eq.s32.totalorder %s24, 1
      %p103 = por %p101, %p102
      %p104 = scmp.ne.s32.totalorder %s93, %s94
      %p105 = scmp.eq.s32.totalorder %s24, 0
      %p106 = por %p104, %p105
      %p107 = scmp.ne.s32.totalorder %s93, %s94
      %p108 = scmp.eq.s32.totalorder %s25, 1
      %p109 = por %p107, %p108
      %p111 = scmp.ne.s32.totalorder %s94, %s110
      %p112 = scmp.eq.s32.totalorder %s25, 0
      %p113 = por %p111, %p112
      %s115 = sadd.s32 %s114, 1
      %p118 = scmp.eq.s32.totalorder %s19, 1
      %p119 = scmp.ne.s32.totalorder %s114, %s116
      %p120 = scmp.eq.s32.totalorder %s19, 0
      %p121 = por %p119, %p120
      %p122 = scmp.ne.s32.totalorder %s114, %s116
      %p123 = scmp.eq.s32.totalorder %s24, 1
      %p124 = por %p122, %p123
      %p125 = scmp.ne.s32.totalorder %s116, %s117
      %p126 = scmp.eq.s32.totalorder %s24, 0
      %p127 = por %p125, %p126
      %p128 = scmp.ne.s32.totalorder %s116, %s117
      %p129 = scmp.eq.s32.totalorder %s25, 1
      %p130 = por %p128, %p129
      %p132 = scmp.ne.s32.totalorder %s117, %s131
      %p133 = scmp.eq.s32.totalorder %s25, 0
      %p134 = por %p132, %p133
      %s136 = sadd.s32 %s135, 1
      %p139 = scmp.eq.s32.totalorder %s19, 1
      %p140 = scmp.ne.s32.totalorder %s135, %s137
      %p141 = scmp.eq.s32.totalorder %s19, 0
      %p142 = por %p140, %p141
      %p143 = scmp.ne.s32.totalorder %s135, %s137
      %p144 = scmp.eq.s32.totalorder %s24, 1
      %p145 = por %p143, %p144
      %p146 = scmp.ne.s32.totalorder %s137, %s138
      %p147 = scmp.eq.s32.totalorder %s24, 0
      %p148 = por %p146, %p147
      %p149 = scmp.ne.s32.totalorder %s137, %s138
      %p150 = scmp.eq.s32.totalorder %s25, 1
      %p151 = por %p149, %p150
      %p153 = scmp.ne.s32.totalorder %s138, %s152
      %p154 = scmp.eq.s32.totalorder %s25, 0
      %p155 = por %p153, %p154
      %s157 = sadd.s32 %s156, 1
      %p160 = scmp.eq.s32.totalorder %s19, 1
      %p161 = scmp.ne.s32.totalorder %s156, %s158
      %p162 = scmp.eq.s32.totalorder %s19, 0
      %p163 = por %p161, %p162
      %p164 = scmp.ne.s32.totalorder %s156, %s158
      %p165 = scmp.eq.s32.totalorder %s24, 1
      %p166 = por %p164, %p165
      %p167 = scmp.ne.s32.totalorder %s158, %s159
      %p168 = scmp.eq.s32.totalorder %s24, 0
      %p169 = por %p167, %p168
      %p170 = scmp.ne.s32.totalorder %s158, %s159
      %p171 = scmp.eq.s32.totalorder %s25, 1
      %p172 = por %p170, %p171
      %p174 = scmp.ne.s32.totalorder %s159, %s173
      %p175 = scmp.eq.s32.totalorder %s25, 0
      %p176 = por %p174, %p175
      %s177 = ssub.s32 %s26, %s38
      %p178 = scmp.eq.s32.totalorder %s177, 0
      %s180 = sadd.s32 %s179, 1
      %s181 = scalar_select %p178, %s179, %s180
      %p184 = pneg %p178
      %p185 = scmp.eq.s32.totalorder %s19, 1
      %p186 = por %p184, %p185
      %p187 = scmp.ne.s32.totalorder %s179, %s182
      %p188 = scmp.eq.s32.totalorder %s19, 0
      %p189 = por %p187, %p188
      %p190 = scmp.ne.s32.totalorder %s179, %s182
      %p191 = scmp.eq.s32.totalorder %s24, 1
      %p192 = por %p190, %p191
      %p193 = scmp.ne.s32.totalorder %s182, %s183
      %p194 = scmp.eq.s32.totalorder %s24, 0
      %p195 = por %p193, %p194
      %p196 = scmp.ne.s32.totalorder %s182, %s183
      %p197 = scmp.eq.s32.totalorder %s25, 1
      %p198 = por %p196, %p197
      %p200 = scmp.ne.s32.totalorder %s183, %s199
      %p201 = scmp.eq.s32.totalorder %s25, 0
      %p202 = por %p200, %p201
      %p203 = scmp.le.s32.totalorder 1, %s19
      %p204 = scmp.lt.s32.totalorder %s19, 3
      %p205 = pnand %p203, %p204
      %p206 = pneg %p205
      // Predicated region
      $region9: #{tpu_custom_call.1} parent=5 // pred_check
        _
      $region10: #{tpu_custom_call.1} parent=5 // pred_check_branch
        %208 = sbr.rel (%p205) target = $region12
      $region11: #{tpu_custom_call.1} parent=5 // pred_region
        %s209 = ssub.s32 %s19, 1
        // Predicated region
        $region13: #{tpu_custom_call.1} parent=11 // pred_check
          %p210 = pneg %p80
        $region14: #{tpu_custom_call.1} parent=11 // pred_check_branch
          %212 = sbr.rel (%p210) target = $region16
        $region15: #{tpu_custom_call.1} parent=11 // pred_region
          %s214 = ssub.s32 2048, 2048
          %215 = vsyncadd [#allocation7], %s214
          %s216 = sshll.u32 [#allocation6], 4
          %s217 = int_to_ptr.vmem [resolvable:$true] %s216
          %222 = dma.hbm_to_vmem [thread:$0]  %s1, 2048, %s217, [#allocation7], 64, 64, 4
        $region16: #{tpu_custom_call.1} parent=11 // pred_fallthru
          _
        // Predicated region
        $region17: #{tpu_custom_call.1} parent=11 // pred_check
          %p223 = pneg %p127
        $region18: #{tpu_custom_call.1} parent=11 // pred_check_branch
          %225 = sbr.rel (%p223) target = $region20
        $region19: #{tpu_custom_call.1} parent=11 // pred_region
          %s227 = ssub.s32 2048, 2048
          %228 = vsyncadd [#allocation7], %s227
          %s229 = sshll.u32 [#allocation9], 4
          %s230 = int_to_ptr.vmem [resolvable:$true] %s229
          %235 = dma.hbm_to_vmem [thread:$0]  %s3, 2048, %s230, [#allocation7], 64, 64, 4
        $region20: #{tpu_custom_call.1} parent=11 // pred_fallthru
          _
        // Predicated region
        $region21: #{tpu_custom_call.1} parent=11 // pred_check
          %p236 = pneg %p148
        $region22: #{tpu_custom_call.1} parent=11 // pred_check_branch
          %238 = sbr.rel (%p236) target = $region24
        $region23: #{tpu_custom_call.1} parent=11 // pred_region
          _
        $region24: #{tpu_custom_call.1} parent=11 // pred_fallthru
          _
        // Predicated region
        $region25: #{tpu_custom_call.1} parent=11 // pred_check
          %p239 = pneg %p169
        $region26: #{tpu_custom_call.1} parent=11 // pred_check_branch
          %241 = sbr.rel (%p239) target = $region28
        $region27: #{tpu_custom_call.1} parent=11 // pred_region
          _
        $region28: #{tpu_custom_call.1} parent=11 // pred_fallthru
          _
      $region12: #{tpu_custom_call.1} parent=5 // pred_fallthru
        _
      %p242 = scmp.lt.s32.totalorder %s19, 2
      // Predicated region
      $region29: #{tpu_custom_call.1} parent=5 // pred_check
        %p243 = pneg %p242
      $region30: #{tpu_custom_call.1} parent=5 // pred_check_branch
        %245 = sbr.rel (%p243) target = $region32
      $region31: #{tpu_custom_call.1} parent=5 // pred_region
        // Predicated region
        $region33: #{tpu_custom_call.1} parent=31 // pred_check
          %p246 = pneg %p53
        $region34: #{tpu_custom_call.1} parent=31 // pred_check_branch
          %248 = sbr.rel (%p246) target = $region36
        $region35: #{tpu_custom_call.1} parent=31 // pred_region
          %s249 = sand.u32 %s19, 1
          %s250 = scalar_lea.sflag [#allocation4], %s249
          %s251 = sand.u32 %s43, 1
          %s252 = smul.addr %s251, 128
          %s253 = scalar_lea.vmem [#allocation3], %s252
          %s254 = smul.u32 16, %s26
          %s255 = smul.u32 2, %s27
          %s257 = ssub.s32 2048, 2048
          %258 = vsyncadd %s250, %s257
          %s259 = smul.addr %s254, 2
          %s260 = sadd.s32 %s255, %s259
          %s261 = smul.addr %s260, 64
          %s262 = scalar_lea.hbm %s0, %s261
          %s263 = sshll.u32 %s253, 4
          %s264 = int_to_ptr.vmem [resolvable:$true] %s263
          %269 = dma.hbm_to_vmem [thread:$0]  %s262, 2048, %s264, %s250, 128, 128, 8
        $region36: #{tpu_custom_call.1} parent=31 // pred_fallthru
          _
        // Predicated region
        $region37: #{tpu_custom_call.1} parent=31 // pred_check
          %p270 = pneg %p100
        $region38: #{tpu_custom_call.1} parent=31 // pred_check_branch
          %272 = sbr.rel (%p270) target = $region40
        $region39: #{tpu_custom_call.1} parent=31 // pred_region
          %s273 = sand.u32 %s19, 1
          %s274 = scalar_lea.sflag [#allocation4], %s273
          %s275 = sand.u32 %s90, 1
          %s276 = smul.addr %s275, 64
          %s277 = scalar_lea.vmem [#allocation8], %s276
          %s278 = smul.u32 16, %s26
          %s280 = ssub.s32 1024, 1024
          %281 = vsyncadd %s274, %s280
          %s282 = smul.addr %s278, 64
          %s283 = scalar_lea.hbm %s2, %s282
          %s284 = sshll.u32 %s277, 4
          %s285 = int_to_ptr.vmem [resolvable:$true] %s284
          %290 = dma.hbm_to_vmem [thread:$0]  %s283, 1024, %s285, %s274, 64, 64, 4
        $region40: #{tpu_custom_call.1} parent=31 // pred_fallthru
          _
      $region32: #{tpu_custom_call.1} parent=5 // pred_fallthru
        _
      %p291 = scmp.le.s32.totalorder 1, %s19
      %p292 = scmp.lt.s32.totalorder %s19, 3
      %p293 = pnand %p291, %p292
      %p294 = pneg %p293
      // Predicated region
      $region41: #{tpu_custom_call.1} parent=5 // pred_check
        _
      $region42: #{tpu_custom_call.1} parent=5 // pred_check_branch
        %296 = sbr.rel (%p293) target = $region44
      $region43: #{tpu_custom_call.1} parent=5 // pred_region
        %s297 = ssub.s32 %s19, 1
        %s298 = sand.u32 %s24, 1
        %s299 = scalar_lea.sflag [#allocation4], %s298
        %s300 = sand.u32 %s46, 1
        %s301 = smul.addr %s300, 128
        %s302 = scalar_lea.vmem [#allocation3], %s301
        // Predicated region
        $region45: #{tpu_custom_call.1} parent=43 // pred_check
          %p303 = pneg %p59
        $region46: #{tpu_custom_call.1} parent=43 // pred_check_branch
          %305 = sbr.rel (%p303) target = $region48
        $region47: #{tpu_custom_call.1} parent=43 // pred_region
          %306 = dma.done %s299, 2048
        $region48: #{tpu_custom_call.1} parent=43 // pred_fallthru
          _
        // Predicated region
        $region49: #{tpu_custom_call.1} parent=43 // pred_check
          %p307 = pneg %p80
        $region50: #{tpu_custom_call.1} parent=43 // pred_check_branch
          %309 = sbr.rel (%p307) target = $region52
        $region51: #{tpu_custom_call.1} parent=43 // pred_region
          %310 = dma.done [#allocation7], 2048
        $region52: #{tpu_custom_call.1} parent=43 // pred_fallthru
          _
        %s311 = sand.u32 %s24, 1
        %s312 = scalar_lea.sflag [#allocation4], %s311
        %s313 = sand.u32 %s93, 1
        %s314 = smul.addr %s313, 64
        %s315 = scalar_lea.vmem [#allocation8], %s314
        // Predicated region
        $region53: #{tpu_custom_call.1} parent=43 // pred_check
          %p316 = pneg %p106
        $region54: #{tpu_custom_call.1} parent=43 // pred_check_branch
          %318 = sbr.rel (%p316) target = $region56
        $region55: #{tpu_custom_call.1} parent=43 // pred_region
          %319 = dma.done %s312, 1024
        $region56: #{tpu_custom_call.1} parent=43 // pred_fallthru
          _
        // Predicated region
        $region57: #{tpu_custom_call.1} parent=43 // pred_check
          %p320 = pneg %p127
        $region58: #{tpu_custom_call.1} parent=43 // pred_check_branch
          %322 = sbr.rel (%p320) target = $region60
        $region59: #{tpu_custom_call.1} parent=43 // pred_region
          %323 = dma.done [#allocation7], 2048
        $region60: #{tpu_custom_call.1} parent=43 // pred_fallthru
          _
        %s324 = sand.u32 %s24, 1
        %s325 = scalar_lea.sflag [#allocation4], %s324
        %s326 = sand.u32 %s46, 1
        %s327 = smul.addr %s326, 128
        %s328 = scalar_lea.vmem [#allocation3], %s327
        %p329 = pneg %p59
        %p330 = pneg %p56
        %p331 = pneg %p80
        %p332 = pneg %p77
        %s333 = sand.u32 %s24, 1
        %s334 = scalar_lea.sflag [#allocation4], %s333
        %s335 = sand.u32 %s93, 1
        %s336 = smul.addr %s335, 64
        %s337 = scalar_lea.vmem [#allocation8], %s336
        %p338 = pneg %p106
        %p339 = pneg %p103
        %p340 = pneg %p127
        %p341 = pneg %p124
        %p342 = pneg %p148
        %p343 = pneg %p145
        %p344 = pneg %p169
        %p345 = pneg %p166
        %p346 = pneg %p195
        %p347 = pneg %p192
        %s348 = sand.u32 %s182, 1
        %s349 = scalar_lea.sflag [#allocation5], %s348
        %s350 = sand.u32 %s182, 1
        %s351 = smul.addr %s350, 64
        %s352 = scalar_lea.vmem [#allocation10], %s351
        %s353 = smul.u32 16, %s28
        %s354 = smul.u32 2, %s29
        %s355 = smul.u32 16, %s28
        %s356 = smul.u32 16, %s28
        %p358 = scmp.eq.s32.totalorder %s29, 0
        // Predicated region
        $region61: #{tpu_custom_call.1} parent=43 // pred_check
          %p359 = pneg %p358
        $region62: #{tpu_custom_call.1} parent=43 // pred_check_branch
          %361 = sbr.rel (%p359) target = $region64
        $region63: #{tpu_custom_call.1} parent=43 // pred_region
          %362 = vst [vmem:[#allocation2] sm:$0xff] 0.0
          %363 = vst [vmem:[#allocation2 + $0x10] sm:$0xff] 0.0
          %364 = vst [vmem:[#allocation2 + $0x20] sm:$0xff] 0.0
          %365 = vst [vmem:[#allocation2 + $0x30] sm:$0xff] 0.0
          %366 = vst [vmem:[#allocation2 + $0x40] sm:$0xff] 0.0
          %367 = vst [vmem:[#allocation2 + $0x50] sm:$0xff] 0.0
          %368 = vst [vmem:[#allocation2 + $0x60] sm:$0xff] 0.0
          %369 = vst [vmem:[#allocation2 + $0x70] sm:$0xff] 0.0
          %370 = vst [vmem:[#allocation2 + $0x80] sm:$0xff] 0.0
          %371 = vst [vmem:[#allocation2 + $0x90] sm:$0xff] 0.0
          %372 = vst [vmem:[#allocation2 + $0xa0] sm:$0xff] 0.0
          %373 = vst [vmem:[#allocation2 + $0xb0] sm:$0xff] 0.0
          %374 = vst [vmem:[#allocation2 + $0xc0] sm:$0xff] 0.0
          %375 = vst [vmem:[#allocation2 + $0xd0] sm:$0xff] 0.0
          %376 = vst [vmem:[#allocation2 + $0xe0] sm:$0xff] 0.0
          %377 = vst [vmem:[#allocation2 + $0xf0] sm:$0xff] 0.0
          %v378 = vld [vmem:[%s315] sm:$0xf]
          %v379 = vld [vmem:[%s315 + $0x4] sm:$0xf]
          %v380 = vld [vmem:[%s315 + $0x8] sm:$0xf]
          %v381 = vld [vmem:[%s315 + $0xc] sm:$0xf]
          %v382 = vld [vmem:[%s315 + $0x10] sm:$0xf]
          %v383 = vld [vmem:[%s315 + $0x14] sm:$0xf]
          %v384 = vld [vmem:[%s315 + $0x18] sm:$0xf]
          %v385 = vld [vmem:[%s315 + $0x1c] sm:$0xf]
          %v386 = vld [vmem:[%s315 + $0x20] sm:$0xf]
          %v387 = vld [vmem:[%s315 + $0x24] sm:$0xf]
          %v388 = vld [vmem:[%s315 + $0x28] sm:$0xf]
          %v389 = vld [vmem:[%s315 + $0x2c] sm:$0xf]
          %v390 = vld [vmem:[%s315 + $0x30] sm:$0xf]
          %v391 = vld [vmem:[%s315 + $0x34] sm:$0xf]
          %v392 = vld [vmem:[%s315 + $0x38] sm:$0xf]
          %v393 = vld [vmem:[%s315 + $0x3c] sm:$0xf]
          %v394 = vunpack.c.l.bf16 %v378
          %v395 = vunpack.c.l.bf16 %v379
          %v396 = vunpack.c.l.bf16 %v380
          %v397 = vunpack.c.l.bf16 %v381
          %v398 = vunpack.c.l.bf16 %v382
          %v399 = vunpack.c.l.bf16 %v383
          %v400 = vunpack.c.l.bf16 %v384
          %v401 = vunpack.c.l.bf16 %v385
          %v402 = vunpack.c.l.bf16 %v386
          %v403 = vunpack.c.l.bf16 %v387
          %v404 = vunpack.c.l.bf16 %v388
          %v405 = vunpack.c.l.bf16 %v389
          %v406 = vunpack.c.l.bf16 %v390
          %v407 = vunpack.c.l.bf16 %v391
          %v408 = vunpack.c.l.bf16 %v392
          %v409 = vunpack.c.l.bf16 %v393
          %410 = vst [vmem:[#allocation2 + $0x8] sm:$0xff] %v394
          %411 = vst [vmem:[#allocation2 + $0x18] sm:$0xff] %v395
          %412 = vst [vmem:[#allocation2 + $0x28] sm:$0xff] %v396
          %413 = vst [vmem:[#allocation2 + $0x38] sm:$0xff] %v397
          %414 = vst [vmem:[#allocation2 + $0x48] sm:$0xff] %v398
          %415 = vst [vmem:[#allocation2 + $0x58] sm:$0xff] %v399
          %416 = vst [vmem:[#allocation2 + $0x68] sm:$0xff] %v400
          %417 = vst [vmem:[#allocation2 + $0x78] sm:$0xff] %v401
          %418 = vst [vmem:[#allocation2 + $0x88] sm:$0xff] %v402
          %419 = vst [vmem:[#allocation2 + $0x98] sm:$0xff] %v403
          %420 = vst [vmem:[#allocation2 + $0xa8] sm:$0xff] %v404
          %421 = vst [vmem:[#allocation2 + $0xb8] sm:$0xff] %v405
          %422 = vst [vmem:[#allocation2 + $0xc8] sm:$0xff] %v406
          %423 = vst [vmem:[#allocation2 + $0xd8] sm:$0xff] %v407
          %424 = vst [vmem:[#allocation2 + $0xe8] sm:$0xff] %v408
          %425 = vst [vmem:[#allocation2 + $0xf8] sm:$0xff] %v409
        $region64: #{tpu_custom_call.1} parent=43 // pred_fallthru
          _
        %s426 = smul.u32 %s29, 256
        %s427 = sshra.s32 %s426, 3
        %s428 = sand.u32 %s426, 7
        %s429 = smul.addr %s427, 4
        %s430 = scalar_lea.vmem [#allocation6], %s429
        %v431 = vld [vmem:[%s430] sm:$0xf]
        %v432 = vld [vmem:[%s430 + $0x4] sm:$0xf]
        %v433 = vld [vmem:[%s430 + $0x8] sm:$0xf]
        %v434 = vld [vmem:[%s430 + $0xc] sm:$0xf]
        %v435 = vld [vmem:[%s430 + $0x10] sm:$0xf]
        %v436 = vld [vmem:[%s430 + $0x14] sm:$0xf]
        %v437 = vld [vmem:[%s430 + $0x18] sm:$0xf]
        %v438 = vld [vmem:[%s430 + $0x1c] sm:$0xf]
        %v439 = vld [vmem:[%s430 + $0x20] sm:$0xf]
        %v440 = vld [vmem:[%s430 + $0x24] sm:$0xf]
        %v441 = vld [vmem:[%s430 + $0x28] sm:$0xf]
        %v442 = vld [vmem:[%s430 + $0x2c] sm:$0xf]
        %v443 = vld [vmem:[%s430 + $0x30] sm:$0xf]
        %v444 = vld [vmem:[%s430 + $0x34] sm:$0xf]
        %v445 = vld [vmem:[%s430 + $0x38] sm:$0xf]
        %v446 = vld [vmem:[%s430 + $0x3c] sm:$0xf]
        %v447 = vld [vmem:[%s430 + $0x40] sm:$0xf]
        %v448 = vld [vmem:[%s430 + $0x44] sm:$0xf]
        %v449 = vld [vmem:[%s430 + $0x48] sm:$0xf]
        %v450 = vld [vmem:[%s430 + $0x4c] sm:$0xf]
        %v451 = vld [vmem:[%s430 + $0x50] sm:$0xf]
        %v452 = vld [vmem:[%s430 + $0x54] sm:$0xf]
        %v453 = vld [vmem:[%s430 + $0x58] sm:$0xf]
        %v454 = vld [vmem:[%s430 + $0x5c] sm:$0xf]
        %v455 = vld [vmem:[%s430 + $0x60] sm:$0xf]
        %v456 = vld [vmem:[%s430 + $0x64] sm:$0xf]
        %v457 = vld [vmem:[%s430 + $0x68] sm:$0xf]
        %v458 = vld [vmem:[%s430 + $0x6c] sm:$0xf]
        %v459 = vld [vmem:[%s430 + $0x70] sm:$0xf]
        %v460 = vld [vmem:[%s430 + $0x74] sm:$0xf]
        %v461 = vld [vmem:[%s430 + $0x78] sm:$0xf]
        %v462 = vld [vmem:[%s430 + $0x7c] sm:$0xf]
        %v463 = vld [vmem:[#allocation2] sm:$0xff]
        %v464 = vld [vmem:[#allocation2 + $0x10] sm:$0xff]
        %v465 = vld [vmem:[#allocation2 + $0x20] sm:$0xff]
        %v466 = vld [vmem:[#allocation2 + $0x30] sm:$0xff]
        %v467 = vld [vmem:[#allocation2 + $0x40] sm:$0xff]
        %v468 = vld [vmem:[#allocation2 + $0x50] sm:$0xff]
        %v469 = vld [vmem:[#allocation2 + $0x60] sm:$0xff]
        %v470 = vld [vmem:[#allocation2 + $0x70] sm:$0xff]
        %v471 = vld [vmem:[#allocation2 + $0x80] sm:$0xff]
        %v472 = vld [vmem:[#allocation2 + $0x90] sm:$0xff]
        %v473 = vld [vmem:[#allocation2 + $0xa0] sm:$0xff]
        %v474 = vld [vmem:[#allocation2 + $0xb0] sm:$0xff]
        %v475 = vld [vmem:[#allocation2 + $0xc0] sm:$0xff]
        %v476 = vld [vmem:[#allocation2 + $0xd0] sm:$0xff]
        %v477 = vld [vmem:[#allocation2 + $0xe0] sm:$0xff]
        %v478 = vld [vmem:[#allocation2 + $0xf0] sm:$0xff]
        %v479 = vld [vmem:[%s302] sm:$0xff]
        %v480 = vld [vmem:[%s302 + $0x8] sm:$0xff]
        %v481 = vld [vmem:[%s302 + $0x10] sm:$0xff]
        %v482 = vld [vmem:[%s302 + $0x18] sm:$0xff]
        %v483 = vld [vmem:[%s302 + $0x20] sm:$0xff]
        %v484 = vld [vmem:[%s302 + $0x28] sm:$0xff]
        %v485 = vld [vmem:[%s302 + $0x30] sm:$0xff]
        %v486 = vld [vmem:[%s302 + $0x38] sm:$0xff]
        %v487 = vld [vmem:[%s302 + $0x40] sm:$0xff]
        %v488 = vld [vmem:[%s302 + $0x48] sm:$0xff]
        %v489 = vld [vmem:[%s302 + $0x50] sm:$0xff]
        %v490 = vld [vmem:[%s302 + $0x58] sm:$0xff]
        %v491 = vld [vmem:[%s302 + $0x60] sm:$0xff]
        %v492 = vld [vmem:[%s302 + $0x68] sm:$0xff]
        %v493 = vld [vmem:[%s302 + $0x70] sm:$0xff]
        %v494 = vld [vmem:[%s302 + $0x78] sm:$0xff]
        %v511 = vunpack.c.l.b16 %v479
        %v512 = vunpack.c.h.b16 %v479
        %v513 = vunpack.c.l.b16 %v480
        %v514 = vunpack.c.h.b16 %v480
        %v515 = vunpack.c.l.b16 %v481
        %v516 = vunpack.c.h.b16 %v481
        %v517 = vunpack.c.l.b16 %v482
        %v518 = vunpack.c.h.b16 %v482
        %v519 = vunpack.c.l.b16 %v483
        %v520 = vunpack.c.h.b16 %v483
        %v521 = vunpack.c.l.b16 %v484
        %v522 = vunpack.c.h.b16 %v484
        %v523 = vunpack.c.l.b16 %v485
        %v524 = vunpack.c.h.b16 %v485
        %v525 = vunpack.c.l.b16 %v486
        %v526 = vunpack.c.h.b16 %v486
        %v527 = vunpack.c.l.b16 %v487
        %v528 = vunpack.c.h.b16 %v487
        %v529 = vunpack.c.l.b16 %v488
        %v530 = vunpack.c.h.b16 %v488
        %v531 = vunpack.c.l.b16 %v489
        %v532 = vunpack.c.h.b16 %v489
        %v533 = vunpack.c.l.b16 %v490
        %v534 = vunpack.c.h.b16 %v490
        %v535 = vunpack.c.l.b16 %v491
        %v536 = vunpack.c.h.b16 %v491
        %v537 = vunpack.c.l.b16 %v492
        %v538 = vunpack.c.h.b16 %v492
        %v539 = vunpack.c.l.b16 %v493
        %v540 = vunpack.c.h.b16 %v493
        %v541 = vunpack.c.l.b16 %v494
        %v542 = vunpack.c.h.b16 %v494
        %v543 = vpack.c.b16 %v513, %v511
        %v544 = vpack.c.b16 %v514, %v512
        %v545 = vpack.c.b16 %v517, %v515
        %v546 = vpack.c.b16 %v518, %v516
        %v547 = vpack.c.b16 %v521, %v519
        %v548 = vpack.c.b16 %v522, %v520
        %v549 = vpack.c.b16 %v525, %v523
        %v550 = vpack.c.b16 %v526, %v524
        %v551 = vpack.c.b16 %v529, %v527
        %v552 = vpack.c.b16 %v530, %v528
        %v553 = vpack.c.b16 %v533, %v531
        %v554 = vpack.c.b16 %v534, %v532
        %v555 = vpack.c.b16 %v537, %v535
        %v556 = vpack.c.b16 %v538, %v536
        %v557 = vpack.c.b16 %v541, %v539
        %v558 = vpack.c.b16 %v542, %v540
        %v607 = vunpack.c.l.b16 %v431
        %v608 = vunpack.c.l.b16 %v432
        %v609 = vunpack.c.l.b16 %v433
        %v610 = vunpack.c.l.b16 %v434
        %v611 = vunpack.c.l.b16 %v435
        %v612 = vunpack.c.l.b16 %v436
        %v613 = vunpack.c.l.b16 %v437
        %v614 = vunpack.c.l.b16 %v438
        %v615 = vunpack.c.l.b16 %v439
        %v616 = vunpack.c.l.b16 %v440
        %v617 = vunpack.c.l.b16 %v441
        %v618 = vunpack.c.l.b16 %v442
        %v619 = vunpack.c.l.b16 %v443
        %v620 = vunpack.c.l.b16 %v444
        %v621 = vunpack.c.l.b16 %v445
        %v622 = vunpack.c.l.b16 %v446
        %v623 = vunpack.c.l.b16 %v447
        %v624 = vunpack.c.l.b16 %v448
        %v625 = vunpack.c.l.b16 %v449
        %v626 = vunpack.c.l.b16 %v450
        %v627 = vunpack.c.l.b16 %v451
        %v628 = vunpack.c.l.b16 %v452
        %v629 = vunpack.c.l.b16 %v453
        %v630 = vunpack.c.l.b16 %v454
        %v631 = vunpack.c.l.b16 %v455
        %v632 = vunpack.c.l.b16 %v456
        %v633 = vunpack.c.l.b16 %v457
        %v634 = vunpack.c.l.b16 %v458
        %v635 = vunpack.c.l.b16 %v459
        %v636 = vunpack.c.l.b16 %v460
        %v637 = vunpack.c.l.b16 %v461
        %v638 = vunpack.c.l.b16 %v462
        %v639 = vpack.c.b16 %v608, %v607
        %v640 = vpack.c.b16 %v610, %v609
        %v641 = vpack.c.b16 %v612, %v611
        %v642 = vpack.c.b16 %v614, %v613
        %v643 = vpack.c.b16 %v616, %v615
        %v644 = vpack.c.b16 %v618, %v617
        %v645 = vpack.c.b16 %v620, %v619
        %v646 = vpack.c.b16 %v622, %v621
        %v647 = vpack.c.b16 %v624, %v623
        %v648 = vpack.c.b16 %v626, %v625
        %v649 = vpack.c.b16 %v628, %v627
        %v650 = vpack.c.b16 %v630, %v629
        %v651 = vpack.c.b16 %v632, %v631
        %v652 = vpack.c.b16 %v634, %v633
        %v653 = vpack.c.b16 %v636, %v635
        %v654 = vpack.c.b16 %v638, %v637
        %671 = vmatprep.subr.bf16.mxu0 0
        %672 = vmatpush1.bf16.msra.mxu0 %v639
        %673 = vmatprep.subr.bf16.mxu0 0
        %674 = vmatpush1.bf16.msra.mxu0 %v640
        %675 = vmatprep.subr.bf16.mxu0 0
        %676 = vmatpush1.bf16.msra.mxu0 %v641
        %677 = vmatprep.subr.bf16.mxu0 0
        %678 = vmatpush1.bf16.msra.mxu0 %v642
        %679 = vmatprep.subr.bf16.mxu0 0
        %680 = vmatpush1.bf16.msra.mxu0 %v643
        %681 = vmatprep.subr.bf16.mxu0 0
        %682 = vmatpush1.bf16.msra.mxu0 %v644
        %683 = vmatprep.subr.bf16.mxu0 0
        %684 = vmatpush1.bf16.msra.mxu0 %v645
        %685 = vmatprep.subr.bf16.mxu0 0
        %686 = vmatpush1.bf16.msra.mxu0 %v646
        %687 = vmatprep.subr.bf16.mxu0 0
        %688 = vmatpush1.bf16.msra.mxu0 %v647
        %689 = vmatprep.subr.bf16.mxu0 0
        %690 = vmatpush1.bf16.msra.mxu0 %v648
        %691 = vmatprep.subr.bf16.mxu0 0
        %692 = vmatpush1.bf16.msra.mxu0 %v649
        %693 = vmatprep.subr.bf16.mxu0 0
        %694 = vmatpush1.bf16.msra.mxu0 %v650
        %695 = vmatprep.subr.bf16.mxu0 0
        %696 = vmatpush1.bf16.msra.mxu0 %v651
        %697 = vmatprep.subr.bf16.mxu0 0
        %698 = vmatpush1.bf16.msra.mxu0 %v652
        %699 = vmatprep.subr.bf16.mxu0 0
        %700 = vmatpush1.bf16.msra.mxu0 %v653
        %701 = vmatprep.subr.bf16.mxu0 0
        %702 = vmatpush1.bf16.msra.mxu0 %v654
        %703 = vmatprep.mubr.bf16.mxu0 %v544
        %704 = vmatmul.mubr.bf16.gmra.mrb[0].mxu0 %v543
        %v705 = vpop.f32.mrb[0].mxu0
        %v706 = vadd.f32 0.0, %v705
        %v707 = vpop.f32.mrb[0].mxu0
        %v708 = vpop.f32.mrb[0].mxu0
        %v709 = vadd.f32 0.0, %v708
        %v710 = vpop.f32.mrb[0].mxu0
        %711 = vmatprep.mubr.bf16.mxu0 %v546
        %712 = vmatmul.mubr.bf16.gmra.mrb[0].mxu0 %v545
        %v713 = vpop.f32.mrb[0].mxu0
        %v714 = vadd.f32 0.0, %v713
        %v715 = vpop.f32.mrb[0].mxu0
        %v716 = vpop.f32.mrb[0].mxu0
        %v717 = vadd.f32 0.0, %v716
        %v718 = vpop.f32.mrb[0].mxu0
        %719 = vmatprep.mubr.bf16.mxu0 %v548
        %720 = vmatmul.mubr.bf16.gmra.mrb[0].mxu0 %v547
        %v721 = vpop.f32.mrb[0].mxu0
        %v722 = vadd.f32 0.0, %v721
        %v723 = vpop.f32.mrb[0].mxu0
        %v724 = vpop.f32.mrb[0].mxu0
        %v725 = vadd.f32 0.0, %v724
        %v726 = vpop.f32.mrb[0].mxu0
        %727 = vmatprep.mubr.bf16.mxu0 %v550
        %728 = vmatmul.mubr.bf16.gmra.mrb[0].mxu0 %v549
        %v729 = vpop.f32.mrb[0].mxu0
        %v730 = vadd.f32 0.0, %v729
        %v731 = vpop.f32.mrb[0].mxu0
        %v732 = vpop.f32.mrb[0].mxu0
        %v733 = vadd.f32 0.0, %v732
        %v734 = vpop.f32.mrb[0].mxu0
        %735 = vmatprep.mubr.bf16.mxu0 %v552
        %736 = vmatmul.mubr.bf16.gmra.mrb[0].mxu0 %v551
        %v737 = vpop.f32.mrb[0].mxu0
        %v738 = vadd.f32 0.0, %v737
        %v739 = vpop.f32.mrb[0].mxu0
        %v740 = vpop.f32.mrb[0].mxu0
        %v741 = vadd.f32 0.0, %v740
        %v742 = vpop.f32.mrb[0].mxu0
        %743 = vmatprep.mubr.bf16.mxu0 %v554
        %744 = vmatmul.mubr.bf16.gmra.mrb[0].mxu0 %v553
        %v745 = vpop.f32.mrb[0].mxu0
        %v746 = vadd.f32 0.0, %v745
        %v747 = vpop.f32.mrb[0].mxu0
        %v748 = vpop.f32.mrb[0].mxu0
        %v749 = vadd.f32 0.0, %v748
        %v750 = vpop.f32.mrb[0].mxu0
        %751 = vmatprep.mubr.bf16.mxu0 %v556
        %752 = vmatmul.mubr.bf16.gmra.mrb[0].mxu0 %v555
        %v753 = vpop.f32.mrb[0].mxu0
        %v754 = vadd.f32 0.0, %v753
        %v755 = vpop.f32.mrb[0].mxu0
        %v756 = vpop.f32.mrb[0].mxu0
        %v757 = vadd.f32 0.0, %v756
        %v758 = vpop.f32.mrb[0].mxu0
        %759 = vmatprep.mubr.bf16.mxu0 %v558
        %760 = vmatmul.mubr.bf16.gmra.mrb[0].mxu0 %v557
        %v761 = vpop.f32.mrb[0].mxu0
        %v762 = vadd.f32 0.0, %v761
        %v763 = vpop.f32.mrb[0].mxu0
        %v764 = vpop.f32.mrb[0].mxu0
        %v765 = vadd.f32 0.0, %v764
        %v766 = vpop.f32.mrb[0].mxu0
        %767 = vdwg.mxu0
        %v768 = vadd.f32 %v463, %v706
        %v769 = vadd.f32 %v464, %v709
        %v770 = vadd.f32 %v465, %v714
        %v771 = vadd.f32 %v466, %v717
        %v772 = vadd.f32 %v467, %v722
        %v773 = vadd.f32 %v468, %v725
        %v774 = vadd.f32 %v469, %v730
        %v775 = vadd.f32 %v470, %v733
        %v776 = vadd.f32 %v471, %v738
        %v777 = vadd.f32 %v472, %v741
        %v778 = vadd.f32 %v473, %v746
        %v779 = vadd.f32 %v474, %v749
        %v780 = vadd.f32 %v475, %v754
        %v781 = vadd.f32 %v476, %v757
        %v782 = vadd.f32 %v477, %v762
        %v783 = vadd.f32 %v478, %v765
        %784 = vst [vmem:[#allocation2] sm:$0xff] %v768
        %785 = vst [vmem:[#allocation2 + $0x10] sm:$0xff] %v769
        %786 = vst [vmem:[#allocation2 + $0x20] sm:$0xff] %v770
        %787 = vst [vmem:[#allocation2 + $0x30] sm:$0xff] %v771
        %788 = vst [vmem:[#allocation2 + $0x40] sm:$0xff] %v772
        %789 = vst [vmem:[#allocation2 + $0x50] sm:$0xff] %v773
        %790 = vst [vmem:[#allocation2 + $0x60] sm:$0xff] %v774
        %791 = vst [vmem:[#allocation2 + $0x70] sm:$0xff] %v775
        %792 = vst [vmem:[#allocation2 + $0x80] sm:$0xff] %v776
        %793 = vst [vmem:[#allocation2 + $0x90] sm:$0xff] %v777
        %794 = vst [vmem:[#allocation2 + $0xa0] sm:$0xff] %v778
        %795 = vst [vmem:[#allocation2 + $0xb0] sm:$0xff] %v779
        %796 = vst [vmem:[#allocation2 + $0xc0] sm:$0xff] %v780
        %797 = vst [vmem:[#allocation2 + $0xd0] sm:$0xff] %v781
        %798 = vst [vmem:[#allocation2 + $0xe0] sm:$0xff] %v782
        %799 = vst [vmem:[#allocation2 + $0xf0] sm:$0xff] %v783
        // Predicated region
        $region65: #{tpu_custom_call.1} parent=43 // pred_check
          %p800 = pneg %p358
        $region66: #{tpu_custom_call.1} parent=43 // pred_check_branch
          %802 = sbr.rel (%p800) target = $region68
        $region67: #{tpu_custom_call.1} parent=43 // pred_region
          %v803 = vld [vmem:[#allocation2] sm:$0xff]
          %v804 = vld [vmem:[#allocation2 + $0x8] sm:$0xff]
          %v805 = vld [vmem:[#allocation2 + $0x10] sm:$0xff]
          %v806 = vld [vmem:[#allocation2 + $0x18] sm:$0xff]
          %v807 = vld [vmem:[#allocation2 + $0x20] sm:$0xff]
          %v808 = vld [vmem:[#allocation2 + $0x28] sm:$0xff]
          %v809 = vld [vmem:[#allocation2 + $0x30] sm:$0xff]
          %v810 = vld [vmem:[#allocation2 + $0x38] sm:$0xff]
          %v811 = vld [vmem:[#allocation2 + $0x40] sm:$0xff]
          %v812 = vld [vmem:[#allocation2 + $0x48] sm:$0xff]
          %v813 = vld [vmem:[#allocation2 + $0x50] sm:$0xff]
          %v814 = vld [vmem:[#allocation2 + $0x58] sm:$0xff]
          %v815 = vld [vmem:[#allocation2 + $0x60] sm:$0xff]
          %v816 = vld [vmem:[#allocation2 + $0x68] sm:$0xff]
          %v817 = vld [vmem:[#allocation2 + $0x70] sm:$0xff]
          %v818 = vld [vmem:[#allocation2 + $0x78] sm:$0xff]
          %v819 = vld [vmem:[#allocation2 + $0x80] sm:$0xff]
          %v820 = vld [vmem:[#allocation2 + $0x88] sm:$0xff]
          %v821 = vld [vmem:[#allocation2 + $0x90] sm:$0xff]
          %v822 = vld [vmem:[#allocation2 + $0x98] sm:$0xff]
          %v823 = vld [vmem:[#allocation2 + $0xa0] sm:$0xff]
          %v824 = vld [vmem:[#allocation2 + $0xa8] sm:$0xff]
          %v825 = vld [vmem:[#allocation2 + $0xb0] sm:$0xff]
          %v826 = vld [vmem:[#allocation2 + $0xb8] sm:$0xff]
          %v827 = vld [vmem:[#allocation2 + $0xc0] sm:$0xff]
          %v828 = vld [vmem:[#allocation2 + $0xc8] sm:$0xff]
          %v829 = vld [vmem:[#allocation2 + $0xd0] sm:$0xff]
          %v830 = vld [vmem:[#allocation2 + $0xd8] sm:$0xff]
          %v831 = vld [vmem:[#allocation2 + $0xe0] sm:$0xff]
          %v832 = vld [vmem:[#allocation2 + $0xe8] sm:$0xff]
          %v833 = vld [vmem:[#allocation2 + $0xf0] sm:$0xff]
          %v834 = vld [vmem:[#allocation2 + $0xf8] sm:$0xff]
          %v835 = vpack.c.bf16 %v805, %v803
          %v836 = vpack.c.bf16 %v806, %v804
          %v837 = vpack.c.bf16 %v809, %v807
          %v838 = vpack.c.bf16 %v810, %v808
          %v839 = vpack.c.bf16 %v813, %v811
          %v840 = vpack.c.bf16 %v814, %v812
          %v841 = vpack.c.bf16 %v817, %v815
          %v842 = vpack.c.bf16 %v818, %v816
          %v843 = vpack.c.bf16 %v821, %v819
          %v844 = vpack.c.bf16 %v822, %v820
          %v845 = vpack.c.bf16 %v825, %v823
          %v846 = vpack.c.bf16 %v826, %v824
          %v847 = vpack.c.bf16 %v829, %v827
          %v848 = vpack.c.bf16 %v830, %v828
          %v849 = vpack.c.bf16 %v833, %v831
          %v850 = vpack.c.bf16 %v834, %v832
          %v851 = vld [vmem:[#allocation9] sm:$0xf]
          %v852 = vld [vmem:[#allocation9 + $0x4] sm:$0xf]
          %v853 = vld [vmem:[#allocation9 + $0x8] sm:$0xf]
          %v854 = vld [vmem:[#allocation9 + $0xc] sm:$0xf]
          %v855 = vld [vmem:[#allocation9 + $0x10] sm:$0xf]
          %v856 = vld [vmem:[#allocation9 + $0x14] sm:$0xf]
          %v857 = vld [vmem:[#allocation9 + $0x18] sm:$0xf]
          %v858 = vld [vmem:[#allocation9 + $0x1c] sm:$0xf]
          %v859 = vld [vmem:[#allocation9 + $0x20] sm:$0xf]
          %v860 = vld [vmem:[#allocation9 + $0x24] sm:$0xf]
          %v861 = vld [vmem:[#allocation9 + $0x28] sm:$0xf]
          %v862 = vld [vmem:[#allocation9 + $0x2c] sm:$0xf]
          %v863 = vld [vmem:[#allocation9 + $0x30] sm:$0xf]
          %v864 = vld [vmem:[#allocation9 + $0x34] sm:$0xf]
          %v865 = vld [vmem:[#allocation9 + $0x38] sm:$0xf]
          %v866 = vld [vmem:[#allocation9 + $0x3c] sm:$0xf]
          %v867 = vld [vmem:[#allocation9 + $0x40] sm:$0xf]
          %v868 = vld [vmem:[#allocation9 + $0x44] sm:$0xf]
          %v869 = vld [vmem:[#allocation9 + $0x48] sm:$0xf]
          %v870 = vld [vmem:[#allocation9 + $0x4c] sm:$0xf]
          %v871 = vld [vmem:[#allocation9 + $0x50] sm:$0xf]
          %v872 = vld [vmem:[#allocation9 + $0x54] sm:$0xf]
          %v873 = vld [vmem:[#allocation9 + $0x58] sm:$0xf]
          %v874 = vld [vmem:[#allocation9 + $0x5c] sm:$0xf]
          %v875 = vld [vmem:[#allocation9 + $0x60] sm:$0xf]
          %v876 = vld [vmem:[#allocation9 + $0x64] sm:$0xf]
          %v877 = vld [vmem:[#allocation9 + $0x68] sm:$0xf]
          %v878 = vld [vmem:[#allocation9 + $0x6c] sm:$0xf]
          %v879 = vld [vmem:[#allocation9 + $0x70] sm:$0xf]
          %v880 = vld [vmem:[#allocation9 + $0x74] sm:$0xf]
          %v881 = vld [vmem:[#allocation9 + $0x78] sm:$0xf]
          %v882 = vld [vmem:[#allocation9 + $0x7c] sm:$0xf]
          %v915 = vunpack.c.l.b16 %v851
          %v916 = vunpack.c.l.b16 %v852
          %v917 = vunpack.c.l.b16 %v853
          %v918 = vunpack.c.l.b16 %v854
          %v919 = vunpack.c.l.b16 %v855
          %v920 = vunpack.c.l.b16 %v856
          %v921 = vunpack.c.l.b16 %v857
          %v922 = vunpack.c.l.b16 %v858
          %v923 = vunpack.c.l.b16 %v859
          %v924 = vunpack.c.l.b16 %v860
          %v925 = vunpack.c.l.b16 %v861
          %v926 = vunpack.c.l.b16 %v862
          %v927 = vunpack.c.l.b16 %v863
          %v928 = vunpack.c.l.b16 %v864
          %v929 = vunpack.c.l.b16 %v865
          %v930 = vunpack.c.l.b16 %v866
          %v931 = vunpack.c.l.b16 %v867
          %v932 = vunpack.c.l.b16 %v868
          %v933 = vunpack.c.l.b16 %v869
          %v934 = vunpack.c.l.b16 %v870
          %v935 = vunpack.c.l.b16 %v871
          %v936 = vunpack.c.l.b16 %v872
          %v937 = vunpack.c.l.b16 %v873
          %v938 = vunpack.c.l.b16 %v874
          %v939 = vunpack.c.l.b16 %v875
          %v940 = vunpack.c.l.b16 %v876
          %v941 = vunpack.c.l.b16 %v877
          %v942 = vunpack.c.l.b16 %v878
          %v943 = vunpack.c.l.b16 %v879
          %v944 = vunpack.c.l.b16 %v880
          %v945 = vunpack.c.l.b16 %v881
          %v946 = vunpack.c.l.b16 %v882
          %v947 = vpack.c.b16 %v916, %v915
          %v948 = vpack.c.b16 %v918, %v917
          %v949 = vpack.c.b16 %v920, %v919
          %v950 = vpack.c.b16 %v922, %v921
          %v951 = vpack.c.b16 %v924, %v923
          %v952 = vpack.c.b16 %v926, %v925
          %v953 = vpack.c.b16 %v928, %v927
          %v954 = vpack.c.b16 %v930, %v929
          %v955 = vpack.c.b16 %v932, %v931
          %v956 = vpack.c.b16 %v934, %v933
          %v957 = vpack.c.b16 %v936, %v935
          %v958 = vpack.c.b16 %v938, %v937
          %v959 = vpack.c.b16 %v940, %v939
          %v960 = vpack.c.b16 %v942, %v941
          %v961 = vpack.c.b16 %v944, %v943
          %v962 = vpack.c.b16 %v946, %v945
          %979 = vmatprep.subr.bf16.mxu0 0
          %980 = vmatpush1.bf16.msra.mxu0 %v947
          %981 = vmatprep.subr.bf16.mxu0 0
          %982 = vmatpush1.bf16.msra.mxu0 %v948
          %983 = vmatprep.subr.bf16.mxu0 0
          %984 = vmatpush1.bf16.msra.mxu0 %v949
          %985 = vmatprep.subr.bf16.mxu0 0
          %986 = vmatpush1.bf16.msra.mxu0 %v950
          %987 = vmatprep.subr.bf16.mxu0 0
          %988 = vmatpush1.bf16.msra.mxu0 %v951
          %989 = vmatprep.subr.bf16.mxu0 0
          %990 = vmatpush1.bf16.msra.mxu0 %v952
          %991 = vmatprep.subr.bf16.mxu0 0
          %992 = vmatpush1.bf16.msra.mxu0 %v953
          %993 = vmatprep.subr.bf16.mxu0 0
          %994 = vmatpush1.bf16.msra.mxu0 %v954
          %995 = vmatprep.subr.bf16.mxu0 0
          %996 = vmatpush1.bf16.msra.mxu0 %v955
          %997 = vmatprep.subr.bf16.mxu0 0
          %998 = vmatpush1.bf16.msra.mxu0 %v956
          %999 = vmatprep.subr.bf16.mxu0 0
          %1000 = vmatpush1.bf16.msra.mxu0 %v957
          %1001 = vmatprep.subr.bf16.mxu0 0
          %1002 = vmatpush1.bf16.msra.mxu0 %v958
          %1003 = vmatprep.subr.bf16.mxu0 0
          %1004 = vmatpush1.bf16.msra.mxu0 %v959
          %1005 = vmatprep.subr.bf16.mxu0 0
          %1006 = vmatpush1.bf16.msra.mxu0 %v960
          %1007 = vmatprep.subr.bf16.mxu0 0
          %1008 = vmatpush1.bf16.msra.mxu0 %v961
          %1009 = vmatprep.subr.bf16.mxu0 0
          %1010 = vmatpush1.bf16.msra.mxu0 %v962
          %1011 = vmatprep.mubr.bf16.mxu0 %v836
          %1012 = vmatmul.mubr.bf16.gmra.mrb[0].mxu0 %v835
          %v1013 = vpop.f32.mrb[0].mxu0
          %v1014 = vadd.f32 0.0, %v1013
          %v1015 = vpop.f32.mrb[0].mxu0
          %v1016 = vpop.f32.mrb[0].mxu0
          %v1017 = vadd.f32 0.0, %v1016
          %v1018 = vpop.f32.mrb[0].mxu0
          %1019 = vmatprep.mubr.bf16.mxu0 %v838
          %1020 = vmatmul.mubr.bf16.gmra.mrb[0].mxu0 %v837
          %v1021 = vpop.f32.mrb[0].mxu0
          %v1022 = vadd.f32 0.0, %v1021
          %v1023 = vpop.f32.mrb[0].mxu0
          %v1024 = vpop.f32.mrb[0].mxu0
          %v1025 = vadd.f32 0.0, %v1024
          %v1026 = vpop.f32.mrb[0].mxu0
          %1027 = vmatprep.mubr.bf16.mxu0 %v840
          %1028 = vmatmul.mubr.bf16.gmra.mrb[0].mxu0 %v839
          %v1029 = vpop.f32.mrb[0].mxu0
          %v1030 = vadd.f32 0.0, %v1029
          %v1031 = vpop.f32.mrb[0].mxu0
          %v1032 = vpop.f32.mrb[0].mxu0
          %v1033 = vadd.f32 0.0, %v1032
          %v1034 = vpop.f32.mrb[0].mxu0
          %1035 = vmatprep.mubr.bf16.mxu0 %v842
          %1036 = vmatmul.mubr.bf16.gmra.mrb[0].mxu0 %v841
          %v1037 = vpop.f32.mrb[0].mxu0
          %v1038 = vadd.f32 0.0, %v1037
          %v1039 = vpop.f32.mrb[0].mxu0
          %v1040 = vpop.f32.mrb[0].mxu0
          %v1041 = vadd.f32 0.0, %v1040
          %v1042 = vpop.f32.mrb[0].mxu0
          %1043 = vmatprep.mubr.bf16.mxu0 %v844
          %1044 = vmatmul.mubr.bf16.gmra.mrb[0].mxu0 %v843
          %v1045 = vpop.f32.mrb[0].mxu0
          %v1046 = vadd.f32 0.0, %v1045
          %v1047 = vpop.f32.mrb[0].mxu0
          %v1048 = vpop.f32.mrb[0].mxu0
          %v1049 = vadd.f32 0.0, %v1048
          %v1050 = vpop.f32.mrb[0].mxu0
          %1051 = vmatprep.mubr.bf16.mxu0 %v846
          %1052 = vmatmul.mubr.bf16.gmra.mrb[0].mxu0 %v845
          %v1053 = vpop.f32.mrb[0].mxu0
          %v1054 = vadd.f32 0.0, %v1053
          %v1055 = vpop.f32.mrb[0].mxu0
          %v1056 = vpop.f32.mrb[0].mxu0
          %v1057 = vadd.f32 0.0, %v1056
          %v1058 = vpop.f32.mrb[0].mxu0
          %1059 = vmatprep.mubr.bf16.mxu0 %v848
          %1060 = vmatmul.mubr.bf16.gmra.mrb[0].mxu0 %v847
          %v1061 = vpop.f32.mrb[0].mxu0
          %v1062 = vadd.f32 0.0, %v1061
          %v1063 = vpop.f32.mrb[0].mxu0
          %v1064 = vpop.f32.mrb[0].mxu0
          %v1065 = vadd.f32 0.0, %v1064
          %v1066 = vpop.f32.mrb[0].mxu0
          %1067 = vmatprep.mubr.bf16.mxu0 %v850
          %1068 = vmatmul.mubr.bf16.gmra.mrb[0].mxu0 %v849
          %v1069 = vpop.f32.mrb[0].mxu0
          %v1070 = vadd.f32 0.0, %v1069
          %v1071 = vpop.f32.mrb[0].mxu0
          %v1072 = vpop.f32.mrb[0].mxu0
          %v1073 = vadd.f32 0.0, %v1072
          %v1074 = vpop.f32.mrb[0].mxu0
          %1075 = vdwg.mxu0
          %1076 = vadd.xlane.f32.xlu0 %v1014
          %v1077 = vpop.xlane.xlu0 %1076
          %1078 = vadd.xlane.f32.xlu0 %v1017
          %v1079 = vpop.xlane.xlu0 %1078
          %1080 = vadd.xlane.f32.xlu0 %v1022
          %v1081 = vpop.xlane.xlu0 %1080
          %1082 = vadd.xlane.f32.xlu0 %v1025
          %v1083 = vpop.xlane.xlu0 %1082
          %1084 = vadd.xlane.f32.xlu0 %v1030
          %v1085 = vpop.xlane.xlu0 %1084
          %1086 = vadd.xlane.f32.xlu0 %v1033
          %v1087 = vpop.xlane.xlu0 %1086
          %1088 = vadd.xlane.f32.xlu0 %v1038
          %v1089 = vpop.xlane.xlu0 %1088
          %1090 = vadd.xlane.f32.xlu0 %v1041
          %v1091 = vpop.xlane.xlu0 %1090
          %1092 = vadd.xlane.f32.xlu0 %v1046
          %v1093 = vpop.xlane.xlu0 %1092
          %1094 = vadd.xlane.f32.xlu0 %v1049
          %v1095 = vpop.xlane.xlu0 %1094
          %1096 = vadd.xlane.f32.xlu0 %v1054
          %v1097 = vpop.xlane.xlu0 %1096
          %1098 = vadd.xlane.f32.xlu0 %v1057
          %v1099 = vpop.xlane.xlu0 %1098
          %1100 = vadd.xlane.f32.xlu0 %v1062
          %v1101 = vpop.xlane.xlu0 %1100
          %1102 = vadd.xlane.f32.xlu0 %v1065
          %v1103 = vpop.xlane.xlu0 %1102
          %1104 = vadd.xlane.f32.xlu0 %v1070
          %v1105 = vpop.xlane.xlu0 %1104
          %1106 = vadd.xlane.f32.xlu0 %v1073
          %v1107 = vpop.xlane.xlu0 %1106
          %v1108 = vmul.f32 %v1077, 0.03125
          %v1109 = vmul.f32 %v1079, 0.03125
          %v1110 = vmul.f32 %v1081, 0.03125
          %v1111 = vmul.f32 %v1083, 0.03125
          %v1112 = vmul.f32 %v1085, 0.03125
          %v1113 = vmul.f32 %v1087, 0.03125
          %v1114 = vmul.f32 %v1089, 0.03125
          %v1115 = vmul.f32 %v1091, 0.03125
          %v1116 = vmul.f32 %v1093, 0.03125
          %v1117 = vmul.f32 %v1095, 0.03125
          %v1118 = vmul.f32 %v1097, 0.03125
          %v1119 = vmul.f32 %v1099, 0.03125
          %v1120 = vmul.f32 %v1101, 0.03125
          %v1121 = vmul.f32 %v1103, 0.03125
          %v1122 = vmul.f32 %v1105, 0.03125
          %v1123 = vmul.f32 %v1107, 0.03125
          %v1124 = vlaneseq
          %v1125 = vand.u32 %v1124, 127
          %vm1126 = vcmp.lt.s32.totalorder %v1125, 32
          %v1127 = vsub.f32 %v1014, %v1108
          %v1128 = vsub.f32 %v1017, %v1109
          %v1129 = vsub.f32 %v1022, %v1110
          %v1130 = vsub.f32 %v1025, %v1111
          %v1131 = vsub.f32 %v1030, %v1112
          %v1132 = vsub.f32 %v1033, %v1113
          %v1133 = vsub.f32 %v1038, %v1114
          %v1134 = vsub.f32 %v1041, %v1115
          %v1135 = vsub.f32 %v1046, %v1116
          %v1136 = vsub.f32 %v1049, %v1117
          %v1137 = vsub.f32 %v1054, %v1118
          %v1138 = vsub.f32 %v1057, %v1119
          %v1139 = vsub.f32 %v1062, %v1120
          %v1140 = vsub.f32 %v1065, %v1121
          %v1141 = vsub.f32 %v1070, %v1122
          %v1142 = vsub.f32 %v1073, %v1123
          %v1143 = vsel %vm1126, %v1127, 0.0
          %v1144 = vsel %vm1126, %v1128, 0.0
          %v1145 = vsel %vm1126, %v1129, 0.0
          %v1146 = vsel %vm1126, %v1130, 0.0
          %v1147 = vsel %vm1126, %v1131, 0.0
          %v1148 = vsel %vm1126, %v1132, 0.0
          %v1149 = vsel %vm1126, %v1133, 0.0
          %v1150 = vsel %vm1126, %v1134, 0.0
          %v1151 = vsel %vm1126, %v1135, 0.0
          %v1152 = vsel %vm1126, %v1136, 0.0
          %v1153 = vsel %vm1126, %v1137, 0.0
          %v1154 = vsel %vm1126, %v1138, 0.0
          %v1155 = vsel %vm1126, %v1139, 0.0
          %v1156 = vsel %vm1126, %v1140, 0.0
          %v1157 = vsel %vm1126, %v1141, 0.0
          %v1158 = vsel %vm1126, %v1142, 0.0
          %v1159 = vmul.f32 %v1143, %v1143
          %v1160 = vmul.f32 %v1144, %v1144
          %v1161 = vmul.f32 %v1145, %v1145
          %v1162 = vmul.f32 %v1146, %v1146
          %v1163 = vmul.f32 %v1147, %v1147
          %v1164 = vmul.f32 %v1148, %v1148
          %v1165 = vmul.f32 %v1149, %v1149
          %v1166 = vmul.f32 %v1150, %v1150
          %v1167 = vmul.f32 %v1151, %v1151
          %v1168 = vmul.f32 %v1152, %v1152
          %v1169 = vmul.f32 %v1153, %v1153
          %v1170 = vmul.f32 %v1154, %v1154
          %v1171 = vmul.f32 %v1155, %v1155
          %v1172 = vmul.f32 %v1156, %v1156
          %v1173 = vmul.f32 %v1157, %v1157
          %v1174 = vmul.f32 %v1158, %v1158
          %1175 = vadd.xlane.f32.xlu0 %v1159
          %v1176 = vpop.xlane.xlu0 %1175
          %1177 = vadd.xlane.f32.xlu0 %v1160
          %v1178 = vpop.xlane.xlu0 %1177
          %1179 = vadd.xlane.f32.xlu0 %v1161
          %v1180 = vpop.xlane.xlu0 %1179
          %1181 = vadd.xlane.f32.xlu0 %v1162
          %v1182 = vpop.xlane.xlu0 %1181
          %1183 = vadd.xlane.f32.xlu0 %v1163
          %v1184 = vpop.xlane.xlu0 %1183
          %1185 = vadd.xlane.f32.xlu0 %v1164
          %v1186 = vpop.xlane.xlu0 %1185
          %1187 = vadd.xlane.f32.xlu0 %v1165
          %v1188 = vpop.xlane.xlu0 %1187
          %1189 = vadd.xlane.f32.xlu0 %v1166
          %v1190 = vpop.xlane.xlu0 %1189
          %1191 = vadd.xlane.f32.xlu0 %v1167
          %v1192 = vpop.xlane.xlu0 %1191
          %1193 = vadd.xlane.f32.xlu0 %v1168
          %v1194 = vpop.xlane.xlu0 %1193
          %1195 = vadd.xlane.f32.xlu0 %v1169
          %v1196 = vpop.xlane.xlu0 %1195
          %1197 = vadd.xlane.f32.xlu0 %v1170
          %v1198 = vpop.xlane.xlu0 %1197
          %1199 = vadd.xlane.f32.xlu0 %v1171
          %v1200 = vpop.xlane.xlu0 %1199
          %1201 = vadd.xlane.f32.xlu0 %v1172
          %v1202 = vpop.xlane.xlu0 %1201
          %1203 = vadd.xlane.f32.xlu0 %v1173
          %v1204 = vpop.xlane.xlu0 %1203
          %1205 = vadd.xlane.f32.xlu0 %v1174
          %v1206 = vpop.xlane.xlu0 %1205
          %v1207 = vmul.f32 %v1176, 0.03125
          %v1208 = vmul.f32 %v1178, 0.03125
          %v1209 = vmul.f32 %v1180, 0.03125
          %v1210 = vmul.f32 %v1182, 0.03125
          %v1211 = vmul.f32 %v1184, 0.03125
          %v1212 = vmul.f32 %v1186, 0.03125
          %v1213 = vmul.f32 %v1188, 0.03125
          %v1214 = vmul.f32 %v1190, 0.03125
          %v1215 = vmul.f32 %v1192, 0.03125
          %v1216 = vmul.f32 %v1194, 0.03125
          %v1217 = vmul.f32 %v1196, 0.03125
          %v1218 = vmul.f32 %v1198, 0.03125
          %v1219 = vmul.f32 %v1200, 0.03125
          %v1220 = vmul.f32 %v1202, 0.03125
          %v1221 = vmul.f32 %v1204, 0.03125
          %v1222 = vmul.f32 %v1206, 0.03125
          %v1223 = vadd.f32 %v1207, 1e-05
          %v1224 = vadd.f32 %v1208, 1e-05
          %v1225 = vadd.f32 %v1209, 1e-05
          %v1226 = vadd.f32 %v1210, 1e-05
          %v1227 = vadd.f32 %v1211, 1e-05
          %v1228 = vadd.f32 %v1212, 1e-05
          %v1229 = vadd.f32 %v1213, 1e-05
          %v1230 = vadd.f32 %v1214, 1e-05
          %v1231 = vadd.f32 %v1215, 1e-05
          %v1232 = vadd.f32 %v1216, 1e-05
          %v1233 = vadd.f32 %v1217, 1e-05
          %v1234 = vadd.f32 %v1218, 1e-05
          %v1235 = vadd.f32 %v1219, 1e-05
          %v1236 = vadd.f32 %v1220, 1e-05
          %v1237 = vadd.f32 %v1221, 1e-05
          %v1238 = vadd.f32 %v1222, 1e-05
          %v1239 = vrsqrt.pop %v1223
          %v1240 = vrsqrt.pop %v1224
          %v1241 = vrsqrt.pop %v1225
          %v1242 = vrsqrt.pop %v1226
          %v1243 = vrsqrt.pop %v1227
          %v1244 = vrsqrt.pop %v1228
          %v1245 = vrsqrt.pop %v1229
          %v1246 = vrsqrt.pop %v1230
          %v1247 = vrsqrt.pop %v1231
          %v1248 = vrsqrt.pop %v1232
          %v1249 = vrsqrt.pop %v1233
          %v1250 = vrsqrt.pop %v1234
          %v1251 = vrsqrt.pop %v1235
          %v1252 = vrsqrt.pop %v1236
          %v1253 = vrsqrt.pop %v1237
          %v1254 = vrsqrt.pop %v1238
          %v1255 = vmul.f32 %v1143, %v1239
          %v1256 = vmul.f32 %v1144, %v1240
          %v1257 = vmul.f32 %v1145, %v1241
          %v1258 = vmul.f32 %v1146, %v1242
          %v1259 = vmul.f32 %v1147, %v1243
          %v1260 = vmul.f32 %v1148, %v1244
          %v1261 = vmul.f32 %v1149, %v1245
          %v1262 = vmul.f32 %v1150, %v1246
          %v1263 = vmul.f32 %v1151, %v1247
          %v1264 = vmul.f32 %v1152, %v1248
          %v1265 = vmul.f32 %v1153, %v1249
          %v1266 = vmul.f32 %v1154, %v1250
          %v1267 = vmul.f32 %v1155, %v1251
          %v1268 = vmul.f32 %v1156, %v1252
          %v1269 = vmul.f32 %v1157, %v1253
          %v1270 = vmul.f32 %v1158, %v1254
          %v1271 = vld [vmem:[%s4] sm:$0x1]
          %v1273 = vlaneseq
          %v1274 = vshrl.u32 %v1273, 7
          %v1275 = vsub.s32 0, %v1274
          %v1276 = vrot.slane %v1271, %v1275
          %v1278 = vmul.f32 %v1255, %v1276
          %v1279 = vmul.f32 %v1256, %v1276
          %v1280 = vmul.f32 %v1257, %v1276
          %v1281 = vmul.f32 %v1258, %v1276
          %v1282 = vmul.f32 %v1259, %v1276
          %v1283 = vmul.f32 %v1260, %v1276
          %v1284 = vmul.f32 %v1261, %v1276
          %v1285 = vmul.f32 %v1262, %v1276
          %v1286 = vmul.f32 %v1263, %v1276
          %v1287 = vmul.f32 %v1264, %v1276
          %v1288 = vmul.f32 %v1265, %v1276
          %v1289 = vmul.f32 %v1266, %v1276
          %v1290 = vmul.f32 %v1267, %v1276
          %v1291 = vmul.f32 %v1268, %v1276
          %v1292 = vmul.f32 %v1269, %v1276
          %v1293 = vmul.f32 %v1270, %v1276
          %v1294 = vld [vmem:[%s5] sm:$0x1]
          %v1296 = vlaneseq
          %v1297 = vshrl.u32 %v1296, 7
          %v1298 = vsub.s32 0, %v1297
          %v1299 = vrot.slane %v1294, %v1298
          %v1301 = vadd.f32 %v1278, %v1299
          %v1302 = vadd.f32 %v1279, %v1299
          %v1303 = vadd.f32 %v1280, %v1299
          %v1304 = vadd.f32 %v1281, %v1299
          %v1305 = vadd.f32 %v1282, %v1299
          %v1306 = vadd.f32 %v1283, %v1299
          %v1307 = vadd.f32 %v1284, %v1299
          %v1308 = vadd.f32 %v1285, %v1299
          %v1309 = vadd.f32 %v1286, %v1299
          %v1310 = vadd.f32 %v1287, %v1299
          %v1311 = vadd.f32 %v1288, %v1299
          %v1312 = vadd.f32 %v1289, %v1299
          %v1313 = vadd.f32 %v1290, %v1299
          %v1314 = vadd.f32 %v1291, %v1299
          %v1315 = vadd.f32 %v1292, %v1299
          %v1316 = vadd.f32 %v1293, %v1299
          %v1317 = vmax.f32 %v1301, 0.0
          %v1318 = vmax.f32 %v1302, 0.0
          %v1319 = vmax.f32 %v1303, 0.0
          %v1320 = vmax.f32 %v1304, 0.0
          %v1321 = vmax.f32 %v1305, 0.0
          %v1322 = vmax.f32 %v1306, 0.0
          %v1323 = vmax.f32 %v1307, 0.0
          %v1324 = vmax.f32 %v1308, 0.0
          %v1325 = vmax.f32 %v1309, 0.0
          %v1326 = vmax.f32 %v1310, 0.0
          %v1327 = vmax.f32 %v1311, 0.0
          %v1328 = vmax.f32 %v1312, 0.0
          %v1329 = vmax.f32 %v1313, 0.0
          %v1330 = vmax.f32 %v1314, 0.0
          %v1331 = vmax.f32 %v1315, 0.0
          %v1332 = vmax.f32 %v1316, 0.0
          %v1333 = vpack.c.bf16 %v1318, %v1317
          %v1334 = vpack.c.bf16 %v1320, %v1319
          %v1335 = vpack.c.bf16 %v1322, %v1321
          %v1336 = vpack.c.bf16 %v1324, %v1323
          %v1337 = vpack.c.bf16 %v1326, %v1325
          %v1338 = vpack.c.bf16 %v1328, %v1327
          %v1339 = vpack.c.bf16 %v1330, %v1329
          %v1340 = vpack.c.bf16 %v1332, %v1331
          %v1349 = vunpack.c.l.b16 %v1333
          %v1350 = vunpack.c.h.b16 %v1333
          %v1351 = vunpack.c.l.b16 %v1334
          %v1352 = vunpack.c.h.b16 %v1334
          %v1353 = vunpack.c.l.b16 %v1335
          %v1354 = vunpack.c.h.b16 %v1335
          %v1355 = vunpack.c.l.b16 %v1336
          %v1356 = vunpack.c.h.b16 %v1336
          %v1357 = vunpack.c.l.b16 %v1337
          %v1358 = vunpack.c.h.b16 %v1337
          %v1359 = vunpack.c.l.b16 %v1338
          %v1360 = vunpack.c.h.b16 %v1338
          %v1361 = vunpack.c.l.b16 %v1339
          %v1362 = vunpack.c.h.b16 %v1339
          %v1363 = vunpack.c.l.b16 %v1340
          %v1364 = vunpack.c.h.b16 %v1340
          %v1365 = vpack.c.b16 %v1349, %v1349
          %v1366 = vpack.c.b16 %v1350, %v1350
          %v1367 = vpack.c.b16 %v1351, %v1351
          %v1368 = vpack.c.b16 %v1352, %v1352
          %v1369 = vpack.c.b16 %v1353, %v1353
          %v1370 = vpack.c.b16 %v1354, %v1354
          %v1371 = vpack.c.b16 %v1355, %v1355
          %v1372 = vpack.c.b16 %v1356, %v1356
          %v1373 = vpack.c.b16 %v1357, %v1357
          %v1374 = vpack.c.b16 %v1358, %v1358
          %v1375 = vpack.c.b16 %v1359, %v1359
          %v1376 = vpack.c.b16 %v1360, %v1360
          %v1377 = vpack.c.b16 %v1361, %v1361
          %v1378 = vpack.c.b16 %v1362, %v1362
          %v1379 = vpack.c.b16 %v1363, %v1363
          %v1380 = vpack.c.b16 %v1364, %v1364
          %1397 = vst [vmem:[%s352] sm:$0xf] %v1365
          %1398 = vst [vmem:[%s352 + $0x4] sm:$0xf] %v1366
          %1399 = vst [vmem:[%s352 + $0x8] sm:$0xf] %v1367
          %1400 = vst [vmem:[%s352 + $0xc] sm:$0xf] %v1368
          %1401 = vst [vmem:[%s352 + $0x10] sm:$0xf] %v1369
          %1402 = vst [vmem:[%s352 + $0x14] sm:$0xf] %v1370
          %1403 = vst [vmem:[%s352 + $0x18] sm:$0xf] %v1371
          %1404 = vst [vmem:[%s352 + $0x1c] sm:$0xf] %v1372
          %1405 = vst [vmem:[%s352 + $0x20] sm:$0xf] %v1373
          %1406 = vst [vmem:[%s352 + $0x24] sm:$0xf] %v1374
          %1407 = vst [vmem:[%s352 + $0x28] sm:$0xf] %v1375
          %1408 = vst [vmem:[%s352 + $0x2c] sm:$0xf] %v1376
          %1409 = vst [vmem:[%s352 + $0x30] sm:$0xf] %v1377
          %1410 = vst [vmem:[%s352 + $0x34] sm:$0xf] %v1378
          %1411 = vst [vmem:[%s352 + $0x38] sm:$0xf] %v1379
          %1412 = vst [vmem:[%s352 + $0x3c] sm:$0xf] %v1380
        $region68: #{tpu_custom_call.1} parent=43 // pred_fallthru
          _
        %s1413 = sand.u32 %s182, 1
        %s1414 = scalar_lea.sflag [#allocation5], %s1413
        %s1415 = sand.u32 %s182, 1
        %s1416 = smul.addr %s1415, 64
        %s1417 = scalar_lea.vmem [#allocation10], %s1416
        // Predicated region
        $region69: #{tpu_custom_call.1} parent=43 // pred_check
          %p1418 = pneg %p192
        $region70: #{tpu_custom_call.1} parent=43 // pred_check_branch
          %1420 = sbr.rel (%p1418) target = $region72
        $region71: #{tpu_custom_call.1} parent=43 // pred_region
          %s1421 = smul.u32 16, %s28
          %s1423 = ssub.s32 1024, 1024
          %1424 = vsyncadd %s1414, %s1423
          %s1425 = smul.addr %s1421, 64
          %s1426 = scalar_lea.hbm %s6, %s1425
          %s1427 = sshll.u32 %s1417, 4
          %s1428 = int_to_ptr.vmem [resolvable:$true] %s1427
          %1433 = dma.vmem_to_hbm [thread:$0]  %s1428, 1024, %s1426, %s1414, 64, 64, 4
        $region72: #{tpu_custom_call.1} parent=43 // pred_fallthru
          _
      $region44: #{tpu_custom_call.1} parent=5 // pred_fallthru
        _
      %p1434 = scmp.le.s32.totalorder 2, %s19
      // Predicated region
      $region73: #{tpu_custom_call.1} parent=5 // pred_check
        %p1435 = pneg %p1434
      $region74: #{tpu_custom_call.1} parent=5 // pred_check_branch
        %1437 = sbr.rel (%p1435) target = $region76
      $region75: #{tpu_custom_call.1} parent=5 // pred_region
        %s1438 = ssub.s32 %s19, 2
        // Predicated region
        $region77: #{tpu_custom_call.1} parent=75 // pred_check
          %p1439 = pneg %p198
        $region78: #{tpu_custom_call.1} parent=75 // pred_check_branch
          %1441 = sbr.rel (%p1439) target = $region80
        $region79: #{tpu_custom_call.1} parent=75 // pred_region
          %s1442 = sand.u32 %s183, 1
          %s1443 = scalar_lea.sflag [#allocation5], %s1442
          %s1444 = sand.u32 %s183, 1
          %s1445 = smul.addr %s1444, 64
          %s1446 = scalar_lea.vmem [#allocation10], %s1445
          %1447 = dma.done %s1443, 1024
        $region80: #{tpu_custom_call.1} parent=75 // pred_fallthru
          _
      $region76: #{tpu_custom_call.1} parent=5 // pred_fallthru
        _
    $region6: #{tpu_custom_call.1} parent=1 // loop_footer
      %s23 = sadd.s32 1, %s19
    $region7: #{tpu_custom_call.1} parent=1 // loop_footer_branch
      %18 = sbr.rel target = $region3
    $region8: #{tpu_custom_call.1} parent=1 // loop_exit
      _
    %1448 = vsyncpa [#allocation4], 1
    %s1449 = scalar_lea.sflag [#allocation4], 1
    %1450 = vsyncpa %s1449, 1
    %1451 = vsyncpa [#allocation7], 1
    %1452 = vsyncpa [#allocation5], 1
    %s1453 = scalar_lea.sflag [#allocation5], 1
    %1454 = vsyncpa %s1453, 1

</llo_original>
